<compile_context>
chip_gen: v7x
topology: tpu7x:2x2x1
jax: 0.10.0
libtpu: 0.0.40
codegen_flags: <defaults>
</compile_context>

<pallas_src>
import functools
import math

import jax
import jax.numpy as jnp
from jax.experimental import pallas as pl
from jax.experimental.pallas import tpu as pltpu


# Safe on every generation: below v7x's 64 MiB physical VMEM, above v5e's 16 MiB
# default scoped limit.
_VMEM_LIMIT_BYTES = 32 * 1024 * 1024


def _round_up(x, m):
    return ((x + m - 1) // m) * m


def _tpu_params(num_grid_axes=1):
    return pltpu.CompilerParams(
        dimension_semantics=("parallel",) * num_grid_axes,
        vmem_limit_bytes=_VMEM_LIMIT_BYTES,
    )


# ----------------------------------------------------------------------------
# Kernel 1: real part of the FFT over the length axis, channels-last.
#   out[f, c] = sum_l cos(2*pi*f*l/L) * x[l, c]  ==  Re(FFT_L(x))[f, c]
# Only the non-redundant half (H = L//2 + 1 rows) is computed; the caller
# mirrors the rest (Re X[f] == Re X[L-f] for real input).
# ----------------------------------------------------------------------------
def _rfft_real_kernel(cos_ref, x_ref, o_ref):
    o_ref[0] = jnp.dot(
        cos_ref[...], x_ref[0].astype(jnp.bfloat16),
        preferred_element_type=jnp.float32,
    ).astype(o_ref.dtype)


def _rfft_real(x, cos_half):
    N, L, C = x.shape
    H = cos_half.shape[0]
    flops = 2 * N * H * L * C
    bytes_acc = 4 * N * L * C + 4 * N * H * C + 2 * H * L
    # NOTE: at very large L the (H, L) cosine block dominates VMEM; add an
    # H-tile grid axis there.  At this preset's L it fits with large margin.
    return pl.pallas_call(
        _rfft_real_kernel,
        out_shape=jax.ShapeDtypeStruct((N, H, C), jnp.float32),
        grid=(N,),
        in_specs=[
            pl.BlockSpec((H, L), lambda n: (0, 0)),
            pl.BlockSpec((1, L, C), lambda n: (n, 0, 0)),
        ],
        out_specs=pl.BlockSpec((1, H, C), lambda n: (n, 0, 0)),
        compiler_params=_tpu_params(1),
        cost_estimate=pl.CostEstimate(
            flops=flops, transcendentals=0, bytes_accessed=bytes_acc),
    )(cos_half, x)


# ----------------------------------------------------------------------------
# Kernel 2: fused conv1d + (folded) BatchNorm + bias + ReLU, channels-last.
# Used for both SeparableConv1d layers (collapsed to dense at init) and the
# plain Conv1d.  conv = accumulation over k taps of shifted MXU matmuls.
# ----------------------------------------------------------------------------
def _stride_pack(x, k, stride, pad):
    """Pad + FREE reshape so conv taps become static slices inside the kernel.

    (N, L, C) -> (N, Lpad//stride, stride*C); padded position p = q*stride + r
    lives at [:, q, r*C:(r+1)*C].  No im2col expansion, no strided loads.
    """
    N, L, C = x.shape
    lout = (L + 2 * pad - k) // stride + 1
    need = stride * (lout - 1) + k              # last padded position read + 1
    lpad = _round_up(need, stride)
    pad_r = lpad - L - pad
    xp = jnp.pad(x, ((0, 0), (pad, max(pad_r, 0)), (0, 0)))[:, :lpad, :]
    return xp.reshape(N, lpad // stride, stride * C), lout


def _conv_bn_relu_kernel(x_ref, w_ref, b_ref, o_ref, *, k, stride, lout, c_in):
    # One batch element per grid step.  x_ref block: (1, Lpad//stride, stride*c_in)
    xp = x_ref[0]                                   # f32, resident in VMEM
    acc = jnp.zeros((lout, o_ref.shape[-1]), jnp.float32)
    for t in range(k):                              # k is 3 or 5 -> unrolled
        q, r = divmod(t, stride)
        x_t = xp[q:q + lout, r * c_in:(r + 1) * c_in]       # static tap view
        acc = acc + jnp.dot(x_t.astype(jnp.bfloat16), w_ref[t],
                            preferred_element_type=jnp.float32)
    o_ref[0] = jnp.maximum(acc + b_ref[...], 0.0).astype(o_ref.dtype)


def _conv_bn_relu(x, w, b, *, stride, pad):
    """y = relu(conv1d(x, w, stride, pad) + b); w:(k, c_in, f_out) bf16 (BN folded)."""
    N, _, c_in = x.shape
    k, c_in2, f_out = w.shape
    assert c_in == c_in2, (c_in, c_in2)
    xs, lout = _stride_pack(x, k, stride, pad)
    Lw, sC = xs.shape[1], xs.shape[2]
    kernel = functools.partial(_conv_bn_relu_kernel, k=k, stride=stride,
                               lout=lout, c_in=c_in)
    flops = 2 * N * lout * k * c_in * f_out
    bytes_acc = 4 * (N * Lw * sC + N * lout * f_out) + 2 * k * c_in * f_out
    return pl.pallas_call(
        kernel,
        out_shape=jax.ShapeDtypeStruct((N, lout, f_out), jnp.float32),
        grid=(N,),
        in_specs=[
            pl.BlockSpec((1, Lw, sC), lambda n: (n, 0, 0)),
            pl.BlockSpec((k, c_in, f_out), lambda n: (0, 0, 0)),
            pl.BlockSpec((1, f_out), lambda n: (0, 0)),
        ],
        out_specs=pl.BlockSpec((1, lout, f_out), lambda n: (n, 0, 0)),
        compiler_params=_tpu_params(1),
        cost_estimate=pl.CostEstimate(
            flops=flops, transcendentals=0, bytes_accessed=bytes_acc),
    )(xs, w, b)


# ----------------------------------------------------------------------------
# Kernel 3: fused dense head.  fc1+ReLU -> fc2+ReLU -> (Dropout=id) -> fc3+Sigmoid.
# All weights resident in VMEM; row (batch) tiles are the only grid axis.
# ----------------------------------------------------------------------------
def _head_kernel(x_ref, w1_ref, b1_ref, w2_ref, b2_ref, w3_ref, b3_ref, o_ref):
    h = jnp.dot(x_ref[...].astype(jnp.bfloat16), w1_ref[...],
                preferred_element_type=jnp.float32)
    h = jnp.maximum(h + b1_ref[...], 0.0)
    h = jnp.dot(h.astype(jnp.bfloat16), w2_ref[...],
                preferred_element_type=jnp.float32)
    h = jnp.maximum(h + b2_ref[...], 0.0)
    # nn.Dropout -> identity at inference.
    # Final (32 -> 1) layer: VPU multiply + lane reduction; a (32,1) MXU matmul
    # would use 1/128 of the lanes and force masked stores.
    logit = jnp.sum(h * w3_ref[...], axis=-1, keepdims=True) + b3_ref[...]
    o_ref[...] = jax.nn.sigmoid(logit).astype(o_ref.dtype)


def _dense_head(feat, w1, b1, w2, b2, w3, b3):
    n, fdim = feat.shape
    assert fdim == w1.shape[0], (fdim, w1.shape)
    d1 = w1.shape[1]
    d2 = w2.shape[1]
    bm = 256 if n >= 256 else _round_up(n, 8)      # row tile (sublane aligned)
    npad = _round_up(n, bm)
    if npad != n:
        feat = jnp.pad(feat, ((0, npad - n), (0, 0)))
    out = pl.pallas_call(
        _head_kernel,
        out_shape=jax.ShapeDtypeStruct((npad, 1), jnp.float32),
        grid=(npad // bm,),
        in_specs=[
            pl.BlockSpec((bm, fdim), lambda i: (i, 0)),
            pl.BlockSpec((fdim, d1), lambda i: (0, 0)),
            pl.BlockSpec((1, d1), lambda i: (0, 0)),
            pl.BlockSpec((d1, d2), lambda i: (0, 0)),
            pl.BlockSpec((1, d2), lambda i: (0, 0)),
            pl.BlockSpec((1, d2), lambda i: (0, 0)),
            pl.BlockSpec((1, 1), lambda i: (0, 0)),
        ],
        out_specs=pl.BlockSpec((bm, 1), lambda i: (i, 0)),
        compiler_params=_tpu_params(1),
    )(feat, w1, b1, w2, b2, w3, b3)
    return out[:n]


# ----------------------------------------------------------------------------
# Deterministic parameter construction (PyTorch shapes -> kernel layouts),
# with all the eval-mode folding done once at init (host-side f32 math).
# ----------------------------------------------------------------------------
def init_params(key, L, C):
    f1 = f2 = 64
    f3 = 32
    dm1 = dm2 = 32
    k1 = k2 = 3
    k3 = 5
    d1, d2 = 128, 32
    eps = 1e-5
    H = L // 2 + 1
    L3 = L // 8 + 1
    flat_dim = f3 * L3

    ks = jax.random.split(key, 32)
    rnd = lambda i, shape, fan: jax.random.normal(ks[i], shape, jnp.float32) / math.sqrt(fan)

    def bn_stats(i, c):
        g = 1.0 + 0.1 * jax.random.normal(ks[i], (c,), jnp.float32)
        b = 0.1 * jax.random.normal(ks[i + 1], (c,), jnp.float32)
        m = 0.1 * jax.random.normal(ks[i + 2], (c,), jnp.float32)
        v = 0.9 + 0.2 * jnp.abs(jax.random.normal(ks[i + 3], (c,), jnp.float32))
        return g, b, m, v

    p = {}

    # Half cosine matrix for real(FFT): Re X[f] == Re X[L-f] for real input.
    f = jnp.arange(H, dtype=jnp.float32)[:, None]
    l = jnp.arange(L, dtype=jnp.float32)[None, :]
    p["cos_half"] = jnp.cos((2.0 * jnp.pi / L) * f * l).astype(jnp.bfloat16)

    def sepconv_bn(i, c_in, dm, k, f_out):
        # PyTorch-shaped parameters.
        wd = rnd(i, (c_in * dm, 1, k), k)                 # depthwise (grouped) weight
        bd = rnd(i + 1, (c_in * dm,), k)
        wp = rnd(i + 2, (f_out, c_in * dm, 1), c_in * dm)  # pointwise 1x1 weight
        bp = rnd(i + 3, (f_out,), c_in * dm)
        g, beta, mu, var = bn_stats(i + 4, f_out)
        # depthwise∘pointwise (no activation in between) is linear∘linear, so it
        # collapses EXACTLY into one dense conv weight:
        #   W_eff[t, c, j] = sum_m wd[c*dm+m, 0, t] * wp[j, c*dm+m]
        wd_r = wd.reshape(c_in, dm, k)                    # [c, m, t]
        wp_r = wp.reshape(f_out, c_in, dm)                # [j, c, m]
        w_eff = jnp.einsum("cmt,jcm->tcj", wd_r, wp_r)    # (k, c_in, f_out)
        b_eff = wp.reshape(f_out, -1) @ bd + bp           # depthwise bias folded through
        # fold eval-mode BatchNorm1d (per output channel j)
        scale = g / jnp.sqrt(var + eps)
        w_eff = w_eff * scale[None, None, :]
        b_eff = (b_eff - mu) * scale + beta
        return w_eff.astype(jnp.bfloat16), b_eff[None, :].astype(jnp.float32)

    # --- SeparableConv1d #1 (C -> 64, dm 32) + BN, and #2 (64 -> 64, dm 32) + BN
    p["w1"], p["b1"] = sepconv_bn(0, C, dm1, k1, f1)
    p["w2"], p["b2"] = sepconv_bn(8, f1, dm2, k2, f2)

    # --- Conv1d(64 -> 32, k=5, stride=2, padding='same') + BN ---
    w3 = rnd(16, (f3, f2, k3), f2 * k3)                   # torch (out, in, k)
    b3 = rnd(17, (f3,), f2 * k3)
    g, beta, mu, var = bn_stats(18, f3)
    scale = g / jnp.sqrt(var + eps)
    p["w3"] = (jnp.transpose(w3, (2, 1, 0)) * scale[None, None, :]).astype(jnp.bfloat16)
    p["b3"] = (((b3 - mu) * scale + beta)[None, :]).astype(jnp.float32)

    # --- Dense head ---
    # torch.flatten on (N, f3, L3) is channel-major (c*L3 + o); our conv output
    # is channels-last (o*f3 + c).  Fold that permutation into the fc1 rows so
    # no runtime activation transpose is needed.
    w_fc1 = rnd(22, (flat_dim, d1), flat_dim)             # rows indexed c*L3 + o
    w_fc1 = w_fc1.reshape(f3, L3, d1).transpose(1, 0, 2).reshape(flat_dim, d1)
    p["w_fc1"] = w_fc1.astype(jnp.bfloat16)
    p["b_fc1"] = rnd(23, (1, d1), flat_dim)
    p["w_fc2"] = rnd(24, (d1, d2), d1).astype(jnp.bfloat16)
    p["b_fc2"] = rnd(25, (1, d2), d1)
    p["w_fc3"] = rnd(26, (1, d2), d2)                     # f32: used on the VPU reduce path
    p["b_fc3"] = rnd(27, (1, 1), d2)
    return p


# ----------------------------------------------------------------------------
# Forward pass (inference).
# ----------------------------------------------------------------------------
def fft_conv_forward(params, x):
    p = params
    N, L, C = x.shape
    H = L // 2 + 1

    # 1) x <- real(FFT over L), computed channels-last against the precomputed
    #    half cosine matrix; mirror the redundant half (Re X[f] == Re X[L-f]).
    xf = _rfft_real(x, p["cos_half"])                     # (N, H, C)
    tail = jnp.flip(xf[:, 1:L - H + 1, :], axis=1)        # f = H .. L-1
    x = jnp.concatenate([xf, tail], axis=1)               # (N, L, C)

    # 2) SeparableConv1d(C->64, k3, s2, 'same') + BN + ReLU   (one fused kernel)
    x = _conv_bn_relu(x, p["w1"], p["b1"], stride=2, pad=1)        # (N, L1, 64)

    # 3) SeparableConv1d(64->64, k3, s2, 'same') + BN + ReLU
    x = _conv_bn_relu(x, p["w2"], p["b2"], stride=2, pad=1)        # (N, L2, 64)

    # 4) Conv1d(64->32, k5, s2, 'same') + BN + Flatten + ReLU (ReLU is
    #    elementwise, hoisted into the kernel; flatten ordering folded into fc1).
    # TODO(synk): PyTorch rejects padding='same' with stride>1; we use the
    #             symmetric (k-1)//2 padding convention (matches L//8+1 sizing).
    x = _conv_bn_relu(x, p["w3"], p["b3"], stride=2, pad=2)        # (N, L3, 32)
    feat = x.reshape(N, -1)                                        # (N, 32*L3)

    # 5) Linear(->128)+ReLU -> Linear(->32)+ReLU -> Dropout(id) -> Linear(->1)+Sigmoid
    return _dense_head(feat, p["w_fc1"], p["b_fc1"], p["w_fc2"], p["b_fc2"],
                       p["w_fc3"], p["b_fc3"])                      # (N, 1)


if __name__ == "__main__":
    # input_shape = (L, C); input tensor is (N, L, C).  L chosen so the module's
    # own Linear(f3*(L//8+1), .) bookkeeping matches the conv arithmetic.
    N, L, C = 2, 20, 4
    key = jax.random.PRNGKey(0)
    kx, kp = jax.random.split(key)
    x = jax.random.normal(kx, (N, L, C), jnp.float32)

    params = init_params(kp, L, C)
    fwd = jax.jit(fft_conv_forward)
    out = jax.block_until_ready(fwd(params, x))

    assert out.shape == (N, 1), out.shape
    assert bool(jnp.all(jnp.isfinite(out))), "non-finite output"
    assert bool(jnp.all((out >= 0.0) & (out <= 1.0))), "sigmoid output out of range"
    print("KERNEL_OK")
</pallas_src>

<mosaic_0001>
module attributes {stable_mosaic.version = 11 : i64} {
  func.func @_rfft_real_kernel(%arg0: i32, %arg1: memref<11x20xbf16, #tpu.memory_space<vmem>>, %arg2: memref<1x20x4xf32, #tpu.memory_space<vmem>>, %arg3: memref<1x11x4xf32, #tpu.memory_space<vmem>>) attributes {dimension_semantics = [#tpu.dimension_semantics<parallel>], iteration_bounds = array<i64: 2>, scalar_prefetch = 0 : i64, scratch_operands = 0 : i64, tpu.core_type = #tpu.core_type<tc>, window_params = [{pipeline_mode = #tpu.pipeline_mode<synchronous>, transform_indices = @transform_0, window_bounds = array<i64: 11, 20>}, {transform_indices = @transform_1, window_bounds = array<i64: 1, 20, 4>}, {transform_indices = @transform_2, window_bounds = array<i64: 1, 11, 4>}]} {
    %c0 = arith.constant 0 : index
    %c0_0 = arith.constant 0 : index
    %0 = vector.load %arg1[%c0, %c0_0] : memref<11x20xbf16, #tpu.memory_space<vmem>>, vector<11x20xbf16>
    %c0_1 = arith.constant 0 : index
    %c0_2 = arith.constant 0 : index
    %c0_3 = arith.constant 0 : index
    %1 = vector.load %arg2[%c0_1, %c0_2, %c0_3] : memref<1x20x4xf32, #tpu.memory_space<vmem>>, vector<1x20x4xf32>
    %2 = vector.shape_cast %1 : vector<1x20x4xf32> to vector<20x4xf32>
    %3 = arith.truncf %2 : vector<20x4xf32> to vector<20x4xbf16>
    %cst = arith.constant dense<0.000000e+00> : vector<11x4xf32>
    %4 = tpu.matmul %0, %3, %cst {dimension_numbers = #tpu.dot_dimension_numbers<[1], [0], [0], [1], [0, 0, 1, 1], [], []>} : vector<11x20xbf16>, vector<20x4xbf16>, vector<11x4xf32> -> vector<11x4xf32>
    %c0_4 = arith.constant 0 : index
    %c0_5 = arith.constant 0 : index
    %c0_6 = arith.constant 0 : index
    %5 = vector.load %arg3[%c0_4, %c0_5, %c0_6] : memref<1x11x4xf32, #tpu.memory_space<vmem>>, vector<1x11x4xf32>
    %6 = vector.shape_cast %5 : vector<1x11x4xf32> to vector<11x4xf32>
    %7 = vector.shape_cast %4 : vector<11x4xf32> to vector<1x11x4xf32>
    tpu.vector_store %arg3[%c0_4, %c0_5, %c0_6], %7 {strides = array<i32>} : memref<1x11x4xf32, #tpu.memory_space<vmem>>, vector<1x11x4xf32>,
    return
  }
  func.func @transform_0(%arg0: i32) -> (i32, i32) {
    %c0_i32 = arith.constant 0 : i32
    %c0_i32_0 = arith.constant 0 : i32
    %c0_i32_1 = arith.constant 0 : i32
    return %c0_i32, %c0_i32_0 : i32, i32
  }
  func.func @transform_1(%arg0: i32) -> (i32, i32, i32) {
    %c0_i32 = arith.constant 0 : i32
    %c0_i32_0 = arith.constant 0 : i32
    %c0_i32_1 = arith.constant 0 : i32
    return %arg0, %c0_i32, %c0_i32_0 : i32, i32, i32
  }
  func.func @transform_2(%arg0: i32) -> (i32, i32, i32) {
    %c0_i32 = arith.constant 0 : i32
    %c0_i32_0 = arith.constant 0 : i32
    %c0_i32_1 = arith.constant 0 : i32
    return %arg0, %c0_i32, %c0_i32_0 : i32, i32, i32
  }
}

module attributes {stable_mosaic.version = 11 : i64} {
  func.func @_conv_bn_relu_kernel(%arg0: i32, %arg1: memref<1x11x8xf32, #tpu.memory_space<vmem>>, %arg2: memref<3x4x64xbf16, #tpu.memory_space<vmem>>, %arg3: memref<1x64xf32, #tpu.memory_space<vmem>>, %arg4: memref<1x10x64xf32, #tpu.memory_space<vmem>>) attributes {dimension_semantics = [#tpu.dimension_semantics<parallel>], iteration_bounds = array<i64: 2>, scalar_prefetch = 0 : i64, scratch_operands = 0 : i64, tpu.core_type = #tpu.core_type<tc>, window_params = [{transform_indices = @transform_0, window_bounds = array<i64: 1, 11, 8>}, {pipeline_mode = #tpu.pipeline_mode<synchronous>, transform_indices = @transform_1, window_bounds = array<i64: 3, 4, 64>}, {pipeline_mode = #tpu.pipeline_mode<synchronous>, transform_indices = @transform_2, window_bounds = array<i64: 1, 64>}, {transform_indices = @transform_3, window_bounds = array<i64: 1, 10, 64>}]} {
    %c0 = arith.constant 0 : index
    %c0_0 = arith.constant 0 : index
    %c0_1 = arith.constant 0 : index
    %0 = vector.load %arg1[%c0, %c0_0, %c0_1] : memref<1x11x8xf32, #tpu.memory_space<vmem>>, vector<1x11x8xf32>
    %1 = vector.shape_cast %0 : vector<1x11x8xf32> to vector<11x8xf32>
    %cst = arith.constant 0.000000e+00 : f32
    %2 = vector.broadcast %cst : f32 to vector<10x64xf32>
    %3 = vector.extract_strided_slice %1 {offsets = [0, 0], sizes = [10, 4], strides = [1, 1]} : vector<11x8xf32> to vector<10x4xf32>
    %4 = arith.truncf %3 : vector<10x4xf32> to vector<10x4xbf16>
    %c0_2 = arith.constant 0 : index
    %c0_3 = arith.constant 0 : index
    %c0_4 = arith.constant 0 : index
    %5 = vector.load %arg2[%c0_2, %c0_3, %c0_4] : memref<3x4x64xbf16, #tpu.memory_space<vmem>>, vector<1x4x64xbf16>
    %6 = vector.shape_cast %5 : vector<1x4x64xbf16> to vector<4x64xbf16>
    %cst_5 = arith.constant dense<0.000000e+00> : vector<10x64xf32>
    %7 = tpu.matmul %4, %6, %cst_5 {dimension_numbers = #tpu.dot_dimension_numbers<[1], [0], [0], [1], [0, 0, 1, 1], [], []>} : vector<10x4xbf16>, vector<4x64xbf16>, vector<10x64xf32> -> vector<10x64xf32>
    %8 = arith.addf %2, %7 : vector<10x64xf32>
    %9 = vector.extract_strided_slice %1 {offsets = [0, 4], sizes = [10, 4], strides = [1, 1]} : vector<11x8xf32> to vector<10x4xf32>
    %10 = arith.truncf %9 : vector<10x4xf32> to vector<10x4xbf16>
    %c1 = arith.constant 1 : index
    %c0_6 = arith.constant 0 : index
    %c0_7 = arith.constant 0 : index
    %11 = vector.load %arg2[%c1, %c0_6, %c0_7] : memref<3x4x64xbf16, #tpu.memory_space<vmem>>, vector<1x4x64xbf16>
    %12 = vector.shape_cast %11 : vector<1x4x64xbf16> to vector<4x64xbf16>
    %cst_8 = arith.constant dense<0.000000e+00> : vector<10x64xf32>
    %13 = tpu.matmul %10, %12, %cst_8 {dimension_numbers = #tpu.dot_dimension_numbers<[1], [0], [0], [1], [0, 0, 1, 1], [], []>} : vector<10x4xbf16>, vector<4x64xbf16>, vector<10x64xf32> -> vector<10x64xf32>
    %14 = arith.addf %8, %13 : vector<10x64xf32>
    %15 = vector.extract_strided_slice %1 {offsets = [1, 0], sizes = [10, 4], strides = [1, 1]} : vector<11x8xf32> to vector<10x4xf32>
    %16 = arith.truncf %15 : vector<10x4xf32> to vector<10x4xbf16>
    %c2 = arith.constant 2 : index
    %c0_9 = arith.constant 0 : index
    %c0_10 = arith.constant 0 : index
    %17 = vector.load %arg2[%c2, %c0_9, %c0_10] : memref<3x4x64xbf16, #tpu.memory_space<vmem>>, vector<1x4x64xbf16>
    %18 = vector.shape_cast %17 : vector<1x4x64xbf16> to vector<4x64xbf16>
    %cst_11 = arith.constant dense<0.000000e+00> : vector<10x64xf32>
    %19 = tpu.matmul %16, %18, %cst_11 {dimension_numbers = #tpu.dot_dimension_numbers<[1], [0], [0], [1], [0, 0, 1, 1], [], []>} : vector<10x4xbf16>, vector<4x64xbf16>, vector<10x64xf32> -> vector<10x64xf32>
    %20 = arith.addf %14, %19 : vector<10x64xf32>
    %c0_12 = arith.constant 0 : index
    %c0_13 = arith.constant 0 : index
    %21 = vector.load %arg3[%c0_12, %c0_13] : memref<1x64xf32, #tpu.memory_space<vmem>>, vector<1x64xf32>
    %22 = vector.broadcast %21 : vector<1x64xf32> to vector<10x64xf32>
    %23 = arith.addf %20, %22 : vector<10x64xf32>
    %cst_14 = arith.constant 0.000000e+00 : f32
    %24 = vector.broadcast %cst_14 : f32 to vector<10x64xf32>
    %25 = arith.maximumf %23, %24 : vector<10x64xf32>
    %c0_15 = arith.constant 0 : index
    %c0_16 = arith.constant 0 : index
    %c0_17 = arith.constant 0 : index
    %26 = vector.load %arg4[%c0_15, %c0_16, %c0_17] : memref<1x10x64xf32, #tpu.memory_space<vmem>>, vector<1x10x64xf32>
    %27 = vector.shape_cast %26 : vector<1x10x64xf32> to vector<10x64xf32>
    %28 = vector.shape_cast %25 : vector<10x64xf32> to vector<1x10x64xf32>
    tpu.vector_store %arg4[%c0_15, %c0_16, %c0_17], %28 {strides = array<i32>} : memref<1x10x64xf32, #tpu.memory_space<vmem>>, vector<1x10x64xf32>,
    return
  }
  func.func @transform_0(%arg0: i32) -> (i32, i32, i32) {
    %c0_i32 = arith.constant 0 : i32
    %c0_i32_0 = arith.constant 0 : i32
    %c0_i32_1 = arith.constant 0 : i32
    return %arg0, %c0_i32, %c0_i32_0 : i32, i32, i32
  }
  func.func @transform_1(%arg0: i32) -> (i32, i32, i32) {
    %c0_i32 = arith.constant 0 : i32
    %c0_i32_0 = arith.constant 0 : i32
    %c0_i32_1 = arith.constant 0 : i32
    %c0_i32_2 = arith.constant 0 : i32
    return %c0_i32, %c0_i32_0, %c0_i32_1 : i32, i32, i32
  }
  func.func @transform_2(%arg0: i32) -> (i32, i32) {
    %c0_i32 = arith.constant 0 : i32
    %c0_i32_0 = arith.constant 0 : i32
    %c0_i32_1 = arith.constant 0 : i32
    return %c0_i32, %c0_i32_0 : i32, i32
  }
  func.func @transform_3(%arg0: i32) -> (i32, i32, i32) {
    %c0_i32 = arith.constant 0 : i32
    %c0_i32_0 = arith.constant 0 : i32
    %c0_i32_1 = arith.constant 0 : i32
    return %arg0, %c0_i32, %c0_i32_0 : i32, i32, i32
  }
}

module attributes {stable_mosaic.version = 11 : i64} {
  func.func @_conv_bn_relu_kernel(%arg0: i32, %arg1: memref<1x6x128xf32, #tpu.memory_space<vmem>>, %arg2: memref<3x64x64xbf16, #tpu.memory_space<vmem>>, %arg3: memref<1x64xf32, #tpu.memory_space<vmem>>, %arg4: memref<1x5x64xf32, #tpu.memory_space<vmem>>) attributes {dimension_semantics = [#tpu.dimension_semantics<parallel>], iteration_bounds = array<i64: 2>, scalar_prefetch = 0 : i64, scratch_operands = 0 : i64, tpu.core_type = #tpu.core_type<tc>, window_params = [{transform_indices = @transform_0, window_bounds = array<i64: 1, 6, 128>}, {pipeline_mode = #tpu.pipeline_mode<synchronous>, transform_indices = @transform_1, window_bounds = array<i64: 3, 64, 64>}, {pipeline_mode = #tpu.pipeline_mode<synchronous>, transform_indices = @transform_2, window_bounds = array<i64: 1, 64>}, {transform_indices = @transform_3, window_bounds = array<i64: 1, 5, 64>}]} {
    %c0 = arith.constant 0 : index
    %c0_0 = arith.constant 0 : index
    %c0_1 = arith.constant 0 : index
    %0 = vector.load %arg1[%c0, %c0_0, %c0_1] : memref<1x6x128xf32, #tpu.memory_space<vmem>>, vector<1x6x128xf32>
    %1 = vector.shape_cast %0 : vector<1x6x128xf32> to vector<6x128xf32>
    %cst = arith.constant 0.000000e+00 : f32
    %2 = vector.broadcast %cst : f32 to vector<5x64xf32>
    %3 = vector.extract_strided_slice %1 {offsets = [0, 0], sizes = [5, 64], strides = [1, 1]} : vector<6x128xf32> to vector<5x64xf32>
    %4 = arith.truncf %3 : vector<5x64xf32> to vector<5x64xbf16>
    %c0_2 = arith.constant 0 : index
    %c0_3 = arith.constant 0 : index
    %c0_4 = arith.constant 0 : index
    %5 = vector.load %arg2[%c0_2, %c0_3, %c0_4] : memref<3x64x64xbf16, #tpu.memory_space<vmem>>, vector<1x64x64xbf16>
    %6 = vector.shape_cast %5 : vector<1x64x64xbf16> to vector<64x64xbf16>
    %cst_5 = arith.constant dense<0.000000e+00> : vector<5x64xf32>
    %7 = tpu.matmul %4, %6, %cst_5 {dimension_numbers = #tpu.dot_dimension_numbers<[1], [0], [0], [1], [0, 0, 1, 1], [], []>} : vector<5x64xbf16>, vector<64x64xbf16>, vector<5x64xf32> -> vector<5x64xf32>
    %8 = arith.addf %2, %7 : vector<5x64xf32>
    %9 = vector.extract_strided_slice %1 {offsets = [0, 64], sizes = [5, 64], strides = [1, 1]} : vector<6x128xf32> to vector<5x64xf32>
    %10 = arith.truncf %9 : vector<5x64xf32> to vector<5x64xbf16>
    %c1 = arith.constant 1 : index
    %c0_6 = arith.constant 0 : index
    %c0_7 = arith.constant 0 : index
    %11 = vector.load %arg2[%c1, %c0_6, %c0_7] : memref<3x64x64xbf16, #tpu.memory_space<vmem>>, vector<1x64x64xbf16>
    %12 = vector.shape_cast %11 : vector<1x64x64xbf16> to vector<64x64xbf16>
    %cst_8 = arith.constant dense<0.000000e+00> : vector<5x64xf32>
    %13 = tpu.matmul %10, %12, %cst_8 {dimension_numbers = #tpu.dot_dimension_numbers<[1], [0], [0], [1], [0, 0, 1, 1], [], []>} : vector<5x64xbf16>, vector<64x64xbf16>, vector<5x64xf32> -> vector<5x64xf32>
    %14 = arith.addf %8, %13 : vector<5x64xf32>
    %15 = vector.extract_strided_slice %1 {offsets = [1, 0], sizes = [5, 64], strides = [1, 1]} : vector<6x128xf32> to vector<5x64xf32>
    %16 = arith.truncf %15 : vector<5x64xf32> to vector<5x64xbf16>
    %c2 = arith.constant 2 : index
    %c0_9 = arith.constant 0 : index
    %c0_10 = arith.constant 0 : index
    %17 = vector.load %arg2[%c2, %c0_9, %c0_10] : memref<3x64x64xbf16, #tpu.memory_space<vmem>>, vector<1x64x64xbf16>
    %18 = vector.shape_cast %17 : vector<1x64x64xbf16> to vector<64x64xbf16>
    %cst_11 = arith.constant dense<0.000000e+00> : vector<5x64xf32>
    %19 = tpu.matmul %16, %18, %cst_11 {dimension_numbers = #tpu.dot_dimension_numbers<[1], [0], [0], [1], [0, 0, 1, 1], [], []>} : vector<5x64xbf16>, vector<64x64xbf16>, vector<5x64xf32> -> vector<5x64xf32>
    %20 = arith.addf %14, %19 : vector<5x64xf32>
    %c0_12 = arith.constant 0 : index
    %c0_13 = arith.constant 0 : index
    %21 = vector.load %arg3[%c0_12, %c0_13] : memref<1x64xf32, #tpu.memory_space<vmem>>, vector<1x64xf32>
    %22 = vector.broadcast %21 : vector<1x64xf32> to vector<5x64xf32>
    %23 = arith.addf %20, %22 : vector<5x64xf32>
    %cst_14 = arith.constant 0.000000e+00 : f32
    %24 = vector.broadcast %cst_14 : f32 to vector<5x64xf32>
    %25 = arith.maximumf %23, %24 : vector<5x64xf32>
    %c0_15 = arith.constant 0 : index
    %c0_16 = arith.constant 0 : index
    %c0_17 = arith.constant 0 : index
    %26 = vector.load %arg4[%c0_15, %c0_16, %c0_17] : memref<1x5x64xf32, #tpu.memory_space<vmem>>, vector<1x5x64xf32>
    %27 = vector.shape_cast %26 : vector<1x5x64xf32> to vector<5x64xf32>
    %28 = vector.shape_cast %25 : vector<5x64xf32> to vector<1x5x64xf32>
    tpu.vector_store %arg4[%c0_15, %c0_16, %c0_17], %28 {strides = array<i32>} : memref<1x5x64xf32, #tpu.memory_space<vmem>>, vector<1x5x64xf32>,
    return
  }
  func.func @transform_0(%arg0: i32) -> (i32, i32, i32) {
    %c0_i32 = arith.constant 0 : i32
    %c0_i32_0 = arith.constant 0 : i32
    %c0_i32_1 = arith.constant 0 : i32
    return %arg0, %c0_i32, %c0_i32_0 : i32, i32, i32
  }
  func.func @transform_1(%arg0: i32) -> (i32, i32, i32) {
    %c0_i32 = arith.constant 0 : i32
    %c0_i32_0 = arith.constant 0 : i32
    %c0_i32_1 = arith.constant 0 : i32
    %c0_i32_2 = arith.constant 0 : i32
    return %c0_i32, %c0_i32_0, %c0_i32_1 : i32, i32, i32
  }
  func.func @transform_2(%arg0: i32) -> (i32, i32) {
    %c0_i32 = arith.constant 0 : i32
    %c0_i32_0 = arith.constant 0 : i32
    %c0_i32_1 = arith.constant 0 : i32
    return %c0_i32, %c0_i32_0 : i32, i32
  }
  func.func @transform_3(%arg0: i32) -> (i32, i32, i32) {
    %c0_i32 = arith.constant 0 : i32
    %c0_i32_0 = arith.constant 0 : i32
    %c0_i32_1 = arith.constant 0 : i32
    return %arg0, %c0_i32, %c0_i32_0 : i32, i32, i32
  }
}

module attributes {stable_mosaic.version = 11 : i64} {
  func.func @_conv_bn_relu_kernel(%arg0: i32, %arg1: memref<1x5x128xf32, #tpu.memory_space<vmem>>, %arg2: memref<5x64x32xbf16, #tpu.memory_space<vmem>>, %arg3: memref<1x32xf32, #tpu.memory_space<vmem>>, %arg4: memref<1x3x32xf32, #tpu.memory_space<vmem>>) attributes {dimension_semantics = [#tpu.dimension_semantics<parallel>], iteration_bounds = array<i64: 2>, scalar_prefetch = 0 : i64, scratch_operands = 0 : i64, tpu.core_type = #tpu.core_type<tc>, window_params = [{transform_indices = @transform_0, window_bounds = array<i64: 1, 5, 128>}, {pipeline_mode = #tpu.pipeline_mode<synchronous>, transform_indices = @transform_1, window_bounds = array<i64: 5, 64, 32>}, {pipeline_mode = #tpu.pipeline_mode<synchronous>, transform_indices = @transform_2, window_bounds = array<i64: 1, 32>}, {transform_indices = @transform_3, window_bounds = array<i64: 1, 3, 32>}]} {
    %c0 = arith.constant 0 : index
    %c0_0 = arith.constant 0 : index
    %c0_1 = arith.constant 0 : index
    %0 = vector.load %arg1[%c0, %c0_0, %c0_1] : memref<1x5x128xf32, #tpu.memory_space<vmem>>, vector<1x5x128xf32>
    %1 = vector.shape_cast %0 : vector<1x5x128xf32> to vector<5x128xf32>
    %cst = arith.constant 0.000000e+00 : f32
    %2 = vector.broadcast %cst : f32 to vector<3x32xf32>
    %3 = vector.extract_strided_slice %1 {offsets = [0, 0], sizes = [3, 64], strides = [1, 1]} : vector<5x128xf32> to vector<3x64xf32>
    %4 = arith.truncf %3 : vector<3x64xf32> to vector<3x64xbf16>
    %c0_2 = arith.constant 0 : index
    %c0_3 = arith.constant 0 : index
    %c0_4 = arith.constant 0 : index
    %5 = vector.load %arg2[%c0_2, %c0_3, %c0_4] : memref<5x64x32xbf16, #tpu.memory_space<vmem>>, vector<1x64x32xbf16>
    %6 = vector.shape_cast %5 : vector<1x64x32xbf16> to vector<64x32xbf16>
    %cst_5 = arith.constant dense<0.000000e+00> : vector<3x32xf32>
    %7 = tpu.matmul %4, %6, %cst_5 {dimension_numbers = #tpu.dot_dimension_numbers<[1], [0], [0], [1], [0, 0, 1, 1], [], []>} : vector<3x64xbf16>, vector<64x32xbf16>, vector<3x32xf32> -> vector<3x32xf32>
    %8 = arith.addf %2, %7 : vector<3x32xf32>
    %9 = vector.extract_strided_slice %1 {offsets = [0, 64], sizes = [3, 64], strides = [1, 1]} : vector<5x128xf32> to vector<3x64xf32>
    %10 = arith.truncf %9 : vector<3x64xf32> to vector<3x64xbf16>
    %c1 = arith.constant 1 : index
    %c0_6 = arith.constant 0 : index
    %c0_7 = arith.constant 0 : index
    %11 = vector.load %arg2[%c1, %c0_6, %c0_7] : memref<5x64x32xbf16, #tpu.memory_space<vmem>>, vector<1x64x32xbf16>
    %12 = vector.shape_cast %11 : vector<1x64x32xbf16> to vector<64x32xbf16>
    %cst_8 = arith.constant dense<0.000000e+00> : vector<3x32xf32>
    %13 = tpu.matmul %10, %12, %cst_8 {dimension_numbers = #tpu.dot_dimension_numbers<[1], [0], [0], [1], [0, 0, 1, 1], [], []>} : vector<3x64xbf16>, vector<64x32xbf16>, vector<3x32xf32> -> vector<3x32xf32>
    %14 = arith.addf %8, %13 : vector<3x32xf32>
    %15 = vector.extract_strided_slice %1 {offsets = [1, 0], sizes = [3, 64], strides = [1, 1]} : vector<5x128xf32> to vector<3x64xf32>
    %16 = arith.truncf %15 : vector<3x64xf32> to vector<3x64xbf16>
    %c2 = arith.constant 2 : index
    %c0_9 = arith.constant 0 : index
    %c0_10 = arith.constant 0 : index
    %17 = vector.load %arg2[%c2, %c0_9, %c0_10] : memref<5x64x32xbf16, #tpu.memory_space<vmem>>, vector<1x64x32xbf16>
    %18 = vector.shape_cast %17 : vector<1x64x32xbf16> to vector<64x32xbf16>
    %cst_11 = arith.constant dense<0.000000e+00> : vector<3x32xf32>
    %19 = tpu.matmul %16, %18, %cst_11 {dimension_numbers = #tpu.dot_dimension_numbers<[1], [0], [0], [1], [0, 0, 1, 1], [], []>} : vector<3x64xbf16>, vector<64x32xbf16>, vector<3x32xf32> -> vector<3x32xf32>
    %20 = arith.addf %14, %19 : vector<3x32xf32>
    %21 = vector.extract_strided_slice %1 {offsets = [1, 64], sizes = [3, 64], strides = [1, 1]} : vector<5x128xf32> to vector<3x64xf32>
    %22 = arith.truncf %21 : vector<3x64xf32> to vector<3x64xbf16>
    %c3 = arith.constant 3 : index
    %c0_12 = arith.constant 0 : index
    %c0_13 = arith.constant 0 : index
    %23 = vector.load %arg2[%c3, %c0_12, %c0_13] : memref<5x64x32xbf16, #tpu.memory_space<vmem>>, vector<1x64x32xbf16>
    %24 = vector.shape_cast %23 : vector<1x64x32xbf16> to vector<64x32xbf16>
    %cst_14 = arith.constant dense<0.000000e+00> : vector<3x32xf32>
    %25 = tpu.matmul %22, %24, %cst_14 {dimension_numbers = #tpu.dot_dimension_numbers<[1], [0], [0], [1], [0, 0, 1, 1], [], []>} : vector<3x64xbf16>, vector<64x32xbf16>, vector<3x32xf32> -> vector<3x32xf32>
    %26 = arith.addf %20, %25 : vector<3x32xf32>
    %27 = vector.extract_strided_slice %1 {offsets = [2, 0], sizes = [3, 64], strides = [1, 1]} : vector<5x128xf32> to vector<3x64xf32>
    %28 = arith.truncf %27 : vector<3x64xf32> to vector<3x64xbf16>
    %c4 = arith.constant 4 : index
    %c0_15 = arith.constant 0 : index
    %c0_16 = arith.constant 0 : index
    %29 = vector.load %arg2[%c4, %c0_15, %c0_16] : memref<5x64x32xbf16, #tpu.memory_space<vmem>>, vector<1x64x32xbf16>
    %30 = vector.shape_cast %29 : vector<1x64x32xbf16> to vector<64x32xbf16>
    %cst_17 = arith.constant dense<0.000000e+00> : vector<3x32xf32>
    %31 = tpu.matmul %28, %30, %cst_17 {dimension_numbers = #tpu.dot_dimension_numbers<[1], [0], [0], [1], [0, 0, 1, 1], [], []>} : vector<3x64xbf16>, vector<64x32xbf16>, vector<3x32xf32> -> vector<3x32xf32>
    %32 = arith.addf %26, %31 : vector<3x32xf32>
    %c0_18 = arith.constant 0 : index
    %c0_19 = arith.constant 0 : index
    %33 = vector.load %arg3[%c0_18, %c0_19] : memref<1x32xf32, #tpu.memory_space<vmem>>, vector<1x32xf32>
    %34 = vector.broadcast %33 : vector<1x32xf32> to vector<3x32xf32>
    %35 = arith.addf %32, %34 : vector<3x32xf32>
    %cst_20 = arith.constant 0.000000e+00 : f32
    %36 = vector.broadcast %cst_20 : f32 to vector<3x32xf32>
    %37 = arith.maximumf %35, %36 : vector<3x32xf32>
    %c0_21 = arith.constant 0 : index
    %c0_22 = arith.constant 0 : index
    %c0_23 = arith.constant 0 : index
    %38 = vector.load %arg4[%c0_21, %c0_22, %c0_23] : memref<1x3x32xf32, #tpu.memory_space<vmem>>, vector<1x3x32xf32>
    %39 = vector.shape_cast %38 : vector<1x3x32xf32> to vector<3x32xf32>
    %40 = vector.shape_cast %37 : vector<3x32xf32> to vector<1x3x32xf32>
    tpu.vector_store %arg4[%c0_21, %c0_22, %c0_23], %40 {strides = array<i32>} : memref<1x3x32xf32, #tpu.memory_space<vmem>>, vector<1x3x32xf32>,
    return
  }
  func.func @transform_0(%arg0: i32) -> (i32, i32, i32) {
    %c0_i32 = arith.constant 0 : i32
    %c0_i32_0 = arith.constant 0 : i32
    %c0_i32_1 = arith.constant 0 : i32
    return %arg0, %c0_i32, %c0_i32_0 : i32, i32, i32
  }
  func.func @transform_1(%arg0: i32) -> (i32, i32, i32) {
    %c0_i32 = arith.constant 0 : i32
    %c0_i32_0 = arith.constant 0 : i32
    %c0_i32_1 = arith.constant 0 : i32
    %c0_i32_2 = arith.constant 0 : i32
    return %c0_i32, %c0_i32_0, %c0_i32_1 : i32, i32, i32
  }
  func.func @transform_2(%arg0: i32) -> (i32, i32) {
    %c0_i32 = arith.constant 0 : i32
    %c0_i32_0 = arith.constant 0 : i32
    %c0_i32_1 = arith.constant 0 : i32
    return %c0_i32, %c0_i32_0 : i32, i32
  }
  func.func @transform_3(%arg0: i32) -> (i32, i32, i32) {
    %c0_i32 = arith.constant 0 : i32
    %c0_i32_0 = arith.constant 0 : i32
    %c0_i32_1 = arith.constant 0 : i32
    return %arg0, %c0_i32, %c0_i32_0 : i32, i32, i32
  }
}

module attributes {stable_mosaic.version = 11 : i64} {
  func.func @_head_kernel(%arg0: i32, %arg1: memref<8x96xf32, #tpu.memory_space<vmem>>, %arg2: memref<96x128xbf16, #tpu.memory_space<vmem>>, %arg3: memref<1x128xf32, #tpu.memory_space<vmem>>, %arg4: memref<128x32xbf16, #tpu.memory_space<vmem>>, %arg5: memref<1x32xf32, #tpu.memory_space<vmem>>, %arg6: memref<1x32xf32, #tpu.memory_space<vmem>>, %arg7: memref<1x1xf32, #tpu.memory_space<vmem>>, %arg8: memref<8x1xf32, #tpu.memory_space<vmem>>) attributes {dimension_semantics = [#tpu.dimension_semantics<parallel>], iteration_bounds = array<i64: 1>, scalar_prefetch = 0 : i64, scratch_operands = 0 : i64, tpu.core_type = #tpu.core_type<tc>, window_params = [{transform_indices = @transform_0, window_bounds = array<i64: 8, 96>}, {pipeline_mode = #tpu.pipeline_mode<synchronous>, transform_indices = @transform_1, window_bounds = array<i64: 96, 128>}, {pipeline_mode = #tpu.pipeline_mode<synchronous>, transform_indices = @transform_2, window_bounds = array<i64: 1, 128>}, {pipeline_mode = #tpu.pipeline_mode<synchronous>, transform_indices = @transform_3, window_bounds = array<i64: 128, 32>}, {pipeline_mode = #tpu.pipeline_mode<synchronous>, transform_indices = @transform_4, window_bounds = array<i64: 1, 32>}, {pipeline_mode = #tpu.pipeline_mode<synchronous>, transform_indices = @transform_5, window_bounds = array<i64: 1, 32>}, {pipeline_mode = #tpu.pipeline_mode<synchronous>, transform_indices = @transform_6, window_bounds = array<i64: 1, 1>}, {transform_indices = @transform_7, window_bounds = array<i64: 8, 1>}]} {
    %c0 = arith.constant 0 : index
    %c0_0 = arith.constant 0 : index
    %0 = vector.load %arg1[%c0, %c0_0] : memref<8x96xf32, #tpu.memory_space<vmem>>, vector<8x96xf32>
    %1 = arith.truncf %0 : vector<8x96xf32> to vector<8x96xbf16>
    %c0_1 = arith.constant 0 : index
    %c0_2 = arith.constant 0 : index
    %2 = vector.load %arg2[%c0_1, %c0_2] : memref<96x128xbf16, #tpu.memory_space<vmem>>, vector<96x128xbf16>
    %cst = arith.constant dense<0.000000e+00> : vector<8x128xf32>
    %3 = tpu.matmul %1, %2, %cst {dimension_numbers = #tpu.dot_dimension_numbers<[1], [0], [0], [1], [0, 0, 1, 1], [], []>} : vector<8x96xbf16>, vector<96x128xbf16>, vector<8x128xf32> -> vector<8x128xf32>
    %c0_3 = arith.constant 0 : index
    %c0_4 = arith.constant 0 : index
    %4 = vector.load %arg3[%c0_3, %c0_4] : memref<1x128xf32, #tpu.memory_space<vmem>>, vector<1x128xf32>
    %5 = vector.broadcast %4 : vector<1x128xf32> to vector<8x128xf32>
    %6 = arith.addf %3, %5 : vector<8x128xf32>
    %cst_5 = arith.constant 0.000000e+00 : f32
    %7 = vector.broadcast %cst_5 : f32 to vector<8x128xf32>
    %8 = arith.maximumf %6, %7 : vector<8x128xf32>
    %9 = arith.truncf %8 : vector<8x128xf32> to vector<8x128xbf16>
    %c0_6 = arith.constant 0 : index
    %c0_7 = arith.constant 0 : index
    %10 = vector.load %arg4[%c0_6, %c0_7] : memref<128x32xbf16, #tpu.memory_space<vmem>>, vector<128x32xbf16>
    %cst_8 = arith.constant dense<0.000000e+00> : vector<8x32xf32>
    %11 = tpu.matmul %9, %10, %cst_8 {dimension_numbers = #tpu.dot_dimension_numbers<[1], [0], [0], [1], [0, 0, 1, 1], [], []>} : vector<8x128xbf16>, vector<128x32xbf16>, vector<8x32xf32> -> vector<8x32xf32>
    %c0_9 = arith.constant 0 : index
    %c0_10 = arith.constant 0 : index
    %12 = vector.load %arg5[%c0_9, %c0_10] : memref<1x32xf32, #tpu.memory_space<vmem>>, vector<1x32xf32>
    %13 = vector.broadcast %12 : vector<1x32xf32> to vector<8x32xf32>
    %14 = arith.addf %11, %13 : vector<8x32xf32>
    %cst_11 = arith.constant 0.000000e+00 : f32
    %15 = vector.broadcast %cst_11 : f32 to vector<8x32xf32>
    %16 = arith.maximumf %14, %15 : vector<8x32xf32>
    %c0_12 = arith.constant 0 : index
    %c0_13 = arith.constant 0 : index
    %17 = vector.load %arg6[%c0_12, %c0_13] : memref<1x32xf32, #tpu.memory_space<vmem>>, vector<1x32xf32>
    %18 = vector.broadcast %17 : vector<1x32xf32> to vector<8x32xf32>
    %19 = arith.mulf %16, %18 : vector<8x32xf32>
    %cst_14 = arith.constant dense<0.000000e+00> : vector<8xf32>
    %20 = vector.multi_reduction <add>, %19, %cst_14 [1] : vector<8x32xf32> to vector<8xf32>
    %21 = vector.shape_cast %20 : vector<8xf32> to vector<8x1xf32>
    %c0_15 = arith.constant 0 : index
    %c0_16 = arith.constant 0 : index
    %22 = vector.load %arg7[%c0_15, %c0_16] : memref<1x1xf32, #tpu.memory_space<vmem>>, vector<1x1xf32>
    %23 = vector.broadcast %22 : vector<1x1xf32> to vector<8x1xf32>
    %24 = arith.addf %21, %23 : vector<8x1xf32>
    %25 = arith.negf %24 : vector<8x1xf32>
    %26 = math.exp %25 : vector<8x1xf32>
    %cst_17 = arith.constant 1.000000e+00 : f32
    %27 = vector.broadcast %cst_17 : f32 to vector<8x1xf32>
    %28 = arith.addf %27, %26 : vector<8x1xf32>
    %29 = arith.divf %27, %28 : vector<8x1xf32>
    %c0_18 = arith.constant 0 : index
    %c0_19 = arith.constant 0 : index
    %30 = vector.load %arg8[%c0_18, %c0_19] : memref<8x1xf32, #tpu.memory_space<vmem>>, vector<8x1xf32>
    tpu.vector_store %arg8[%c0_18, %c0_19], %29 {strides = array<i32>} : memref<8x1xf32, #tpu.memory_space<vmem>>, vector<8x1xf32>,
    return
  }
  func.func @transform_0(%arg0: i32) -> (i32, i32) {
    %c0_i32 = arith.constant 0 : i32
    %c0_i32_0 = arith.constant 0 : i32
    return %arg0, %c0_i32 : i32, i32
  }
  func.func @transform_1(%arg0: i32) -> (i32, i32) {
    %c0_i32 = arith.constant 0 : i32
    %c0_i32_0 = arith.constant 0 : i32
    %c0_i32_1 = arith.constant 0 : i32
    return %c0_i32, %c0_i32_0 : i32, i32
  }
  func.func @transform_2(%arg0: i32) -> (i32, i32) {
    %c0_i32 = arith.constant 0 : i32
    %c0_i32_0 = arith.constant 0 : i32
    %c0_i32_1 = arith.constant 0 : i32
    return %c0_i32, %c0_i32_0 : i32, i32
  }
  func.func @transform_3(%arg0: i32) -> (i32, i32) {
    %c0_i32 = arith.constant 0 : i32
    %c0_i32_0 = arith.constant 0 : i32
    %c0_i32_1 = arith.constant 0 : i32
    return %c0_i32, %c0_i32_0 : i32, i32
  }
  func.func @transform_4(%arg0: i32) -> (i32, i32) {
    %c0_i32 = arith.constant 0 : i32
    %c0_i32_0 = arith.constant 0 : i32
    %c0_i32_1 = arith.constant 0 : i32
    return %c0_i32, %c0_i32_0 : i32, i32
  }
  func.func @transform_5(%arg0: i32) -> (i32, i32) {
    %c0_i32 = arith.constant 0 : i32
    %c0_i32_0 = arith.constant 0 : i32
    %c0_i32_1 = arith.constant 0 : i32
    return %c0_i32, %c0_i32_0 : i32, i32
  }
  func.func @transform_6(%arg0: i32) -> (i32, i32) {
    %c0_i32 = arith.constant 0 : i32
    %c0_i32_0 = arith.constant 0 : i32
    %c0_i32_1 = arith.constant 0 : i32
    return %c0_i32, %c0_i32_0 : i32, i32
  }
  func.func @transform_7(%arg0: i32) -> (i32, i32) {
    %c0_i32 = arith.constant 0 : i32
    %c0_i32_0 = arith.constant 0 : i32
    return %arg0, %c0_i32 : i32, i32
  }
}

</mosaic_0001>

<llo_original>
// kernel: fft_conv_forward.5
$region0: #{fft_conv_forward.5}
  #allocation0 [shape = 'u32[]', space=smem, size = 0x4, offset = 0x4, fixed_abs, tag = 'smem constant byte address 0x4 - core index']
  #allocation1 [shape = 'u32[144,128]{1,0:T(1,128)}', space=vmem, size = 0x12000, scoped, tag = 'internal scratch']
  %s0 = inlined_call_operand.vmem [shape: bf16[11,20], index: 0, kind: input, shape index: {}]
  %s1 = inlined_call_operand.vmem [shape: f32[2,20,4], index: 1, kind: input, shape index: {}]
  %s2 = inlined_call_operand.vmem [shape: f32[2,11,4], index: 2, kind: output, shape index: {}]
  %s3 = sld [smem:[#allocation0]]
  $region41: #{fft_conv_forward.5} parent=0
    _
  %s5 = ssub.s32 1, %s3
  %s6 = scalar_select 0, %s5, %s3
  loop: start=0, step=1, limit=4
  $region2: #{fft_conv_forward.5} parent=0 // loop_pre_header
    _
  $region3: #{fft_conv_forward.5} parent=0 // loop_header
    %s8 = sphi 0, %s12
    %p9 = scmp.ge.s32.totalorder %s8, 4
    %s16 = sphi 0, %s16
    %s18 = sphi 0, %s16
    %s19 = sphi 0, %s18
    %s33 = sphi 0, %s19
    %s39 = sphi 0, %s41
    %s42 = sphi 0, %s39
    %s43 = sphi 0, %s42
    %s59 = sphi 0, %s43
    %s65 = sphi 0, %s67
    %s68 = sphi 0, %s65
    %s69 = sphi 0, %s68
    %s85 = sphi 0, %s69
  $region4: #{fft_conv_forward.5} parent=0 // loop_header_branch
    %11 = sbr.rel (%p9) target = $region8
  $region5: #{fft_conv_forward.5} parent=0 // loop_body
    %s13 = ssub.s32 %s8, 1
    %s14 = ssub.s32 %s8, 2
    %s15 = sadd.s32 %s8, 1
    %s17 = sadd.s32 %s16, 1
    %p20 = scmp.eq.s32.totalorder %s8, 1
    %p21 = scmp.ne.s32.totalorder %s16, %s18
    %p22 = scmp.eq.s32.totalorder %s8, 0
    %p23 = por %p21, %p22
    %p24 = scmp.ne.s32.totalorder %s16, %s18
    %p25 = scmp.eq.s32.totalorder %s13, 1
    %p26 = por %p24, %p25
    %p27 = scmp.ne.s32.totalorder %s18, %s19
    %p28 = scmp.eq.s32.totalorder %s13, 0
    %p29 = por %p27, %p28
    %p30 = scmp.ne.s32.totalorder %s18, %s19
    %p31 = scmp.eq.s32.totalorder %s14, 1
    %p32 = por %p30, %p31
    %p34 = scmp.ne.s32.totalorder %s19, %s33
    %p35 = scmp.eq.s32.totalorder %s14, 0
    %p36 = por %p34, %p35
    %s37 = ssub.s32 %s8, %s15
    %p38 = scmp.eq.s32.totalorder %s37, 0
    %s40 = sadd.s32 %s39, 1
    %s41 = scalar_select %p38, %s39, %s40
    %p44 = pneg %p38
    %p45 = scmp.eq.s32.totalorder %s8, 1
    %p46 = por %p44, %p45
    %p47 = scmp.ne.s32.totalorder %s39, %s42
    %p48 = scmp.eq.s32.totalorder %s8, 0
    %p49 = por %p47, %p48
    %p50 = scmp.ne.s32.totalorder %s39, %s42
    %p51 = scmp.eq.s32.totalorder %s13, 1
    %p52 = por %p50, %p51
    %p53 = scmp.ne.s32.totalorder %s42, %s43
    %p54 = scmp.eq.s32.totalorder %s13, 0
    %p55 = por %p53, %p54
    %p56 = scmp.ne.s32.totalorder %s42, %s43
    %p57 = scmp.eq.s32.totalorder %s14, 1
    %p58 = por %p56, %p57
    %p60 = scmp.ne.s32.totalorder %s43, %s59
    %p61 = scmp.eq.s32.totalorder %s14, 0
    %p62 = por %p60, %p61
    %s63 = ssub.s32 %s8, %s15
    %p64 = scmp.eq.s32.totalorder %s63, 0
    %s66 = sadd.s32 %s65, 1
    %s67 = scalar_select %p64, %s65, %s66
    %p70 = pneg %p64
    %p71 = scmp.eq.s32.totalorder %s8, 1
    %p72 = por %p70, %p71
    %p73 = scmp.ne.s32.totalorder %s65, %s68
    %p74 = scmp.eq.s32.totalorder %s8, 0
    %p75 = por %p73, %p74
    %p76 = scmp.ne.s32.totalorder %s65, %s68
    %p77 = scmp.eq.s32.totalorder %s13, 1
    %p78 = por %p76, %p77
    %p79 = scmp.ne.s32.totalorder %s68, %s69
    %p80 = scmp.eq.s32.totalorder %s13, 0
    %p81 = por %p79, %p80
    %p82 = scmp.ne.s32.totalorder %s68, %s69
    %p83 = scmp.eq.s32.totalorder %s14, 1
    %p84 = por %p82, %p83
    %p86 = scmp.ne.s32.totalorder %s69, %s85
    %p87 = scmp.eq.s32.totalorder %s14, 0
    %p88 = por %p86, %p87
    %p89 = scmp.le.s32.totalorder 1, %s8
    %p90 = scmp.lt.s32.totalorder %s8, 3
    %p91 = pnand %p89, %p90
    %p92 = pneg %p91
    // Predicated region
    $region9: #{fft_conv_forward.5} parent=5 // pred_check
      _
    $region10: #{fft_conv_forward.5} parent=5 // pred_check_branch
      %94 = sbr.rel (%p91) target = $region12
    $region11: #{fft_conv_forward.5} parent=5 // pred_region
      %s95 = ssub.s32 %s8, 1
      // Predicated region
      $region13: #{fft_conv_forward.5} parent=11 // pred_check
        %p96 = pneg %p29
      $region14: #{fft_conv_forward.5} parent=11 // pred_check_branch
        %98 = sbr.rel (%p96) target = $region16
      $region15: #{fft_conv_forward.5} parent=11 // pred_region
        _
      $region16: #{fft_conv_forward.5} parent=11 // pred_fallthru
        _
    $region12: #{fft_conv_forward.5} parent=5 // pred_fallthru
      _
    %p99 = scmp.lt.s32.totalorder %s8, 2
    // Predicated region
    $region17: #{fft_conv_forward.5} parent=5 // pred_check
      %p100 = pneg %p99
    $region18: #{fft_conv_forward.5} parent=5 // pred_check_branch
      %102 = sbr.rel (%p100) target = $region20
    $region19: #{fft_conv_forward.5} parent=5 // pred_region
      // Predicated region
      $region21: #{fft_conv_forward.5} parent=19 // pred_check
        %p103 = pneg %p49
      $region22: #{fft_conv_forward.5} parent=19 // pred_check_branch
        %105 = sbr.rel (%p103) target = $region24
      $region23: #{fft_conv_forward.5} parent=19 // pred_region
        %p106 = scmp.lt.s32.totalorder %s8, 1
        %s107 = scalar_select %p106, %s8, 1
        %s108 = smul.addr %s107, 3
        %s109 = smul.addr %s108, 8
        %s110 = scalar_lea.vmem %s1, %s109
      $region24: #{fft_conv_forward.5} parent=19 // pred_fallthru
        _
    $region20: #{fft_conv_forward.5} parent=5 // pred_fallthru
      _
    %p111 = scmp.le.s32.totalorder 1, %s8
    %p112 = scmp.lt.s32.totalorder %s8, 3
    %p113 = pnand %p111, %p112
    %p114 = pneg %p113
    // Predicated region
    $region25: #{fft_conv_forward.5} parent=5 // pred_check
      _
    $region26: #{fft_conv_forward.5} parent=5 // pred_check_branch
      %116 = sbr.rel (%p113) target = $region28
    $region27: #{fft_conv_forward.5} parent=5 // pred_region
      %s117 = ssub.s32 %s8, 1
      %p118 = pneg %p29
      %p119 = pneg %p26
      %p120 = scmp.lt.s32.totalorder %s13, 1
      %s121 = scalar_select %p120, %s13, 1
      %s122 = smul.addr %s121, 3
      %s123 = smul.addr %s122, 8
      %s124 = scalar_lea.vmem %s1, %s123
      %p125 = pneg %p55
      %p126 = pneg %p52
      %p127 = pneg %p81
      %p128 = pneg %p78
      %p129 = scmp.lt.s32.totalorder %s13, 1
      %s130 = scalar_select %p129, %s13, 1
      %s131 = smul.addr %s130, 2
      %s132 = smul.addr %s131, 8
      %s133 = scalar_lea.vmem %s2, %s132
      %p134 = scmp.lt.s32.totalorder %s13, 1
      %s135 = scalar_select %p134, %s13, 1
      %s136 = smul.addr %s135, 3
      %s137 = smul.addr %s136, 8
      %s138 = scalar_lea.vmem %s1, %s137
      %p139 = scmp.lt.s32.totalorder %s13, 1
      %s140 = scalar_select %p139, %s13, 1
      %s141 = smul.addr %s140, 2
      %s142 = smul.addr %s141, 8
      %s143 = scalar_lea.vmem %s2, %s142
      %v145 = vld [vmem:[%s0] sm:$0xf]
      %v146 = vld [vmem:[%s0 + $0x4] sm:$0x3]
      %v147 = vld [vmem:[%s138] sm:$0xff]
      %v148 = vld [vmem:[%s138 + $0x8] sm:$0xff]
      %v149 = vld [vmem:[%s138 + $0x10] sm:$0xf]
      %v150 = vpack.c.bf16 %v148, %v147
      %v151 = vpack.c.bf16 %v149, %v149
      %v154 = vunpack.c.l.b16 %v145
      %v155 = vunpack.c.l.b16 %v146
      %v156 = vpack.c.b16 %v155, %v154
      %vm157 = vcmask 162816
      %v159 = vsel %vm157, %v156, 0
      %vm161 = vcmask 1041408
      %v163 = vsel %vm161, %v151, 0
      %165 = vmatprep.subr.bf16.mxu0 0
      %166 = vmatpush1.bf16.msra.mxu0 %v150
      %167 = vmatprep.subr.bf16.mxu0 0
      %168 = vmatpush1.bf16.msra.mxu0 %v163
      %169 = vmatprep.subr.bf16.mxu0 0
      %170 = vmatpush1.bf16.msra.mxu0 0
      %171 = vmatprep.subr.bf16.mxu0 0
      %172 = vmatpush1.bf16.msra.mxu0 0
      %173 = vmatprep.subr.bf16.mxu0 0
      %174 = vmatpush1.bf16.msra.mxu0 0
      %175 = vmatprep.subr.bf16.mxu0 0
      %176 = vmatpush1.bf16.msra.mxu0 0
      %177 = vmatprep.subr.bf16.mxu0 0
      %178 = vmatpush1.bf16.msra.mxu0 0
      %179 = vmatprep.subr.bf16.mxu0 0
      %180 = vmatpush1.bf16.msra.mxu0 0
      %181 = vmatprep.subr.bf16.mxu0 0
      %182 = vmatpush1.bf16.msra.mxu0 0
      %183 = vmatprep.subr.bf16.mxu0 0
      %184 = vmatpush1.bf16.msra.mxu0 0
      %185 = vmatprep.subr.bf16.mxu0 0
      %186 = vmatpush1.bf16.msra.mxu0 0
      %187 = vmatprep.subr.bf16.mxu0 0
      %188 = vmatpush1.bf16.msra.mxu0 0
      %189 = vmatprep.subr.bf16.mxu0 0
      %190 = vmatpush1.bf16.msra.mxu0 0
      %191 = vmatprep.subr.bf16.mxu0 0
      %192 = vmatpush1.bf16.msra.mxu0 0
      %193 = vmatprep.subr.bf16.mxu0 0
      %194 = vmatpush1.bf16.msra.mxu0 0
      %195 = vmatprep.subr.bf16.mxu0 0
      %196 = vmatpush1.bf16.msra.mxu0 0
      %197 = vmatprep.mubr.bf16.mxu0 0
      %198 = vmatmul.mubr.bf16.gmra.mrb[0].mxu0 %v159
      %v199 = vpop.f32.mrb[0].mxu0
      %v200 = vadd.f32 0.0, %v199
      %v201 = vpop.f32.mrb[0].mxu0
      %v202 = vpop.f32.mrb[0].mxu0
      %v203 = vadd.f32 0.0, %v202
      %v204 = vpop.f32.mrb[0].mxu0
      %205 = vdwg.mxu0
      %vm206 = vcmask 31744
      %207 = vst.msk [vmem:[%s143] sm:$0xff] %vm206, %v200
      %vm208 = vcmask 26624
      %209 = vst.msk [vmem:[%s143 + $0x8] sm:$0x7] %vm208, %v203
      %p210 = scmp.lt.s32.totalorder %s13, 1
      %s211 = scalar_select %p210, %s13, 1
      %s212 = smul.addr %s211, 2
      %s213 = smul.addr %s212, 8
      %s214 = scalar_lea.vmem %s2, %s213
      // Predicated region
      $region29: #{fft_conv_forward.5} parent=27 // pred_check
        %p215 = pneg %p78
      $region30: #{fft_conv_forward.5} parent=27 // pred_check_branch
        %217 = sbr.rel (%p215) target = $region32
      $region31: #{fft_conv_forward.5} parent=27 // pred_region
        _
      $region32: #{fft_conv_forward.5} parent=27 // pred_fallthru
        _
    $region28: #{fft_conv_forward.5} parent=5 // pred_fallthru
      _
    %p218 = scmp.le.s32.totalorder 2, %s8
    // Predicated region
    $region33: #{fft_conv_forward.5} parent=5 // pred_check
      %p219 = pneg %p218
    $region34: #{fft_conv_forward.5} parent=5 // pred_check_branch
      %221 = sbr.rel (%p219) target = $region36
    $region35: #{fft_conv_forward.5} parent=5 // pred_region
      %s222 = ssub.s32 %s8, 2
      // Predicated region
      $region37: #{fft_conv_forward.5} parent=35 // pred_check
        %p223 = pneg %p84
      $region38: #{fft_conv_forward.5} parent=35 // pred_check_branch
        %225 = sbr.rel (%p223) target = $region40
      $region39: #{fft_conv_forward.5} parent=35 // pred_region
        %p226 = scmp.lt.s32.totalorder %s14, 1
        %s227 = scalar_select %p226, %s14, 1
        %s228 = smul.addr %s227, 2
        %s229 = smul.addr %s228, 8
        %s230 = scalar_lea.vmem %s2, %s229
      $region40: #{fft_conv_forward.5} parent=35 // pred_fallthru
        _
    $region36: #{fft_conv_forward.5} parent=5 // pred_fallthru
      _
  $region6: #{fft_conv_forward.5} parent=0 // loop_footer
    %s12 = sadd.s32 1, %s8
  $region7: #{fft_conv_forward.5} parent=0 // loop_footer_branch
    %7 = sbr.rel target = $region3
  $region8: #{fft_conv_forward.5} parent=0 // loop_exit
    _

// kernel: fft_conv_forward.6
$region0: #{fft_conv_forward.6}
  #allocation0 [shape = 'u32[]', space=smem, size = 0x4, offset = 0x4, fixed_abs, tag = 'smem constant byte address 0x4 - core index']
  #allocation1 [shape = 'u32[144,128]{1,0:T(1,128)}', space=vmem, size = 0x12000, scoped, tag = 'internal scratch']
  %s0 = inlined_call_operand.vmem [shape: f32[2,11,8], index: 0, kind: input, shape index: {}]
  %s1 = inlined_call_operand.vmem [shape: bf16[3,4,64], index: 1, kind: input, shape index: {}]
  %s2 = inlined_call_operand.vmem [shape: f32[1,64], index: 2, kind: input, shape index: {}]
  %s3 = inlined_call_operand.vmem [shape: f32[2,10,64], index: 3, kind: output, shape index: {}]
  %s4 = sld [smem:[#allocation0]]
  $region45: #{fft_conv_forward.6} parent=0
    _
  %s6 = ssub.s32 1, %s4
  %s7 = scalar_select 0, %s6, %s4
  loop: start=0, step=1, limit=4
  $region2: #{fft_conv_forward.6} parent=0 // loop_pre_header
    _
  $region3: #{fft_conv_forward.6} parent=0 // loop_header
    %s9 = sphi 0, %s13
    %p10 = scmp.ge.s32.totalorder %s9, 4
    %s19 = sphi 0, %s21
    %s22 = sphi 0, %s19
    %s23 = sphi 0, %s22
    %s39 = sphi 0, %s23
    %s43 = sphi 0, %s43
    %s45 = sphi 0, %s43
    %s46 = sphi 0, %s45
    %s60 = sphi 0, %s46
    %s64 = sphi 0, %s64
    %s66 = sphi 0, %s64
    %s67 = sphi 0, %s66
    %s81 = sphi 0, %s67
    %s87 = sphi 0, %s89
    %s90 = sphi 0, %s87
    %s91 = sphi 0, %s90
    %s107 = sphi 0, %s91
  $region4: #{fft_conv_forward.6} parent=0 // loop_header_branch
    %12 = sbr.rel (%p10) target = $region8
  $region5: #{fft_conv_forward.6} parent=0 // loop_body
    %s14 = ssub.s32 %s9, 1
    %s15 = ssub.s32 %s9, 2
    %s16 = sadd.s32 %s9, 1
    %s17 = ssub.s32 %s9, %s16
    %p18 = scmp.eq.s32.totalorder %s17, 0
    %s20 = sadd.s32 %s19, 1
    %s21 = scalar_select %p18, %s19, %s20
    %p24 = pneg %p18
    %p25 = scmp.eq.s32.totalorder %s9, 1
    %p26 = por %p24, %p25
    %p27 = scmp.ne.s32.totalorder %s19, %s22
    %p28 = scmp.eq.s32.totalorder %s9, 0
    %p29 = por %p27, %p28
    %p30 = scmp.ne.s32.totalorder %s19, %s22
    %p31 = scmp.eq.s32.totalorder %s14, 1
    %p32 = por %p30, %p31
    %p33 = scmp.ne.s32.totalorder %s22, %s23
    %p34 = scmp.eq.s32.totalorder %s14, 0
    %p35 = por %p33, %p34
    %p36 = scmp.ne.s32.totalorder %s22, %s23
    %p37 = scmp.eq.s32.totalorder %s15, 1
    %p38 = por %p36, %p37
    %p40 = scmp.ne.s32.totalorder %s23, %s39
    %p41 = scmp.eq.s32.totalorder %s15, 0
    %p42 = por %p40, %p41
    %s44 = sadd.s32 %s43, 1
    %p47 = scmp.eq.s32.totalorder %s9, 1
    %p48 = scmp.ne.s32.totalorder %s43, %s45
    %p49 = scmp.eq.s32.totalorder %s9, 0
    %p50 = por %p48, %p49
    %p51 = scmp.ne.s32.totalorder %s43, %s45
    %p52 = scmp.eq.s32.totalorder %s14, 1
    %p53 = por %p51, %p52
    %p54 = scmp.ne.s32.totalorder %s45, %s46
    %p55 = scmp.eq.s32.totalorder %s14, 0
    %p56 = por %p54, %p55
    %p57 = scmp.ne.s32.totalorder %s45, %s46
    %p58 = scmp.eq.s32.totalorder %s15, 1
    %p59 = por %p57, %p58
    %p61 = scmp.ne.s32.totalorder %s46, %s60
    %p62 = scmp.eq.s32.totalorder %s15, 0
    %p63 = por %p61, %p62
    %s65 = sadd.s32 %s64, 1
    %p68 = scmp.eq.s32.totalorder %s9, 1
    %p69 = scmp.ne.s32.totalorder %s64, %s66
    %p70 = scmp.eq.s32.totalorder %s9, 0
    %p71 = por %p69, %p70
    %p72 = scmp.ne.s32.totalorder %s64, %s66
    %p73 = scmp.eq.s32.totalorder %s14, 1
    %p74 = por %p72, %p73
    %p75 = scmp.ne.s32.totalorder %s66, %s67
    %p76 = scmp.eq.s32.totalorder %s14, 0
    %p77 = por %p75, %p76
    %p78 = scmp.ne.s32.totalorder %s66, %s67
    %p79 = scmp.eq.s32.totalorder %s15, 1
    %p80 = por %p78, %p79
    %p82 = scmp.ne.s32.totalorder %s67, %s81
    %p83 = scmp.eq.s32.totalorder %s15, 0
    %p84 = por %p82, %p83
    %s85 = ssub.s32 %s9, %s16
    %p86 = scmp.eq.s32.totalorder %s85, 0
    %s88 = sadd.s32 %s87, 1
    %s89 = scalar_select %p86, %s87, %s88
    %p92 = pneg %p86
    %p93 = scmp.eq.s32.totalorder %s9, 1
    %p94 = por %p92, %p93
    %p95 = scmp.ne.s32.totalorder %s87, %s90
    %p96 = scmp.eq.s32.totalorder %s9, 0
    %p97 = por %p95, %p96
    %p98 = scmp.ne.s32.totalorder %s87, %s90
    %p99 = scmp.eq.s32.totalorder %s14, 1
    %p100 = por %p98, %p99
    %p101 = scmp.ne.s32.totalorder %s90, %s91
    %p102 = scmp.eq.s32.totalorder %s14, 0
    %p103 = por %p101, %p102
    %p104 = scmp.ne.s32.totalorder %s90, %s91
    %p105 = scmp.eq.s32.totalorder %s15, 1
    %p106 = por %p104, %p105
    %p108 = scmp.ne.s32.totalorder %s91, %s107
    %p109 = scmp.eq.s32.totalorder %s15, 0
    %p110 = por %p108, %p109
    %p111 = scmp.le.s32.totalorder 1, %s9
    %p112 = scmp.lt.s32.totalorder %s9, 3
    %p113 = pnand %p111, %p112
    %p114 = pneg %p113
    // Predicated region
    $region9: #{fft_conv_forward.6} parent=5 // pred_check
      _
    $region10: #{fft_conv_forward.6} parent=5 // pred_check_branch
      %116 = sbr.rel (%p113) target = $region12
    $region11: #{fft_conv_forward.6} parent=5 // pred_region
      %s117 = ssub.s32 %s9, 1
      // Predicated region
      $region13: #{fft_conv_forward.6} parent=11 // pred_check
        %p118 = pneg %p56
      $region14: #{fft_conv_forward.6} parent=11 // pred_check_branch
        %120 = sbr.rel (%p118) target = $region16
      $region15: #{fft_conv_forward.6} parent=11 // pred_region
        _
      $region16: #{fft_conv_forward.6} parent=11 // pred_fallthru
        _
      // Predicated region
      $region17: #{fft_conv_forward.6} parent=11 // pred_check
        %p121 = pneg %p77
      $region18: #{fft_conv_forward.6} parent=11 // pred_check_branch
        %123 = sbr.rel (%p121) target = $region20
      $region19: #{fft_conv_forward.6} parent=11 // pred_region
        _
      $region20: #{fft_conv_forward.6} parent=11 // pred_fallthru
        _
    $region12: #{fft_conv_forward.6} parent=5 // pred_fallthru
      _
    %p124 = scmp.lt.s32.totalorder %s9, 2
    // Predicated region
    $region21: #{fft_conv_forward.6} parent=5 // pred_check
      %p125 = pneg %p124
    $region22: #{fft_conv_forward.6} parent=5 // pred_check_branch
      %127 = sbr.rel (%p125) target = $region24
    $region23: #{fft_conv_forward.6} parent=5 // pred_region
      // Predicated region
      $region25: #{fft_conv_forward.6} parent=23 // pred_check
        %p128 = pneg %p29
      $region26: #{fft_conv_forward.6} parent=23 // pred_check_branch
        %130 = sbr.rel (%p128) target = $region28
      $region27: #{fft_conv_forward.6} parent=23 // pred_region
        %p131 = scmp.lt.s32.totalorder %s9, 1
        %s132 = scalar_select %p131, %s9, 1
        %s133 = smul.addr %s132, 2
        %s134 = smul.addr %s133, 8
        %s135 = scalar_lea.vmem %s0, %s134
      $region28: #{fft_conv_forward.6} parent=23 // pred_fallthru
        _
    $region24: #{fft_conv_forward.6} parent=5 // pred_fallthru
      _
    %p136 = scmp.le.s32.totalorder 1, %s9
    %p137 = scmp.lt.s32.totalorder %s9, 3
    %p138 = pnand %p136, %p137
    %p139 = pneg %p138
    // Predicated region
    $region29: #{fft_conv_forward.6} parent=5 // pred_check
      _
    $region30: #{fft_conv_forward.6} parent=5 // pred_check_branch
      %141 = sbr.rel (%p138) target = $region32
    $region31: #{fft_conv_forward.6} parent=5 // pred_region
      %s142 = ssub.s32 %s9, 1
      %p143 = scmp.lt.s32.totalorder %s14, 1
      %s144 = scalar_select %p143, %s14, 1
      %s145 = smul.addr %s144, 2
      %s146 = smul.addr %s145, 8
      %s147 = scalar_lea.vmem %s0, %s146
      %p148 = pneg %p35
      %p149 = pneg %p32
      %p150 = pneg %p56
      %p151 = pneg %p53
      %p152 = pneg %p77
      %p153 = pneg %p74
      %p154 = pneg %p103
      %p155 = pneg %p100
      %p156 = scmp.lt.s32.totalorder %s14, 1
      %s157 = scalar_select %p156, %s14, 1
      %s158 = smul.addr %s157, 2
      %s159 = smul.addr %s158, 8
      %s160 = scalar_lea.vmem %s3, %s159
      %p161 = scmp.lt.s32.totalorder %s14, 1
      %s162 = scalar_select %p161, %s14, 1
      %s163 = smul.addr %s162, 2
      %s164 = smul.addr %s163, 8
      %s165 = scalar_lea.vmem %s0, %s164
      %p166 = scmp.lt.s32.totalorder %s14, 1
      %s167 = scalar_select %p166, %s14, 1
      %s168 = smul.addr %s167, 2
      %s169 = smul.addr %s168, 8
      %s170 = scalar_lea.vmem %s3, %s169
      %v172 = vld [vmem:[%s165] sm:$0xff]
      %v173 = vld [vmem:[%s165 + $0x8] sm:$0x7]
      %v174 = vpack.c.bf16 %v173, %v172
      %v175 = vld [vmem:[%s1] sm:$0x3]
      %s176 = scalar_lea.vmem %s1, 2
      %v177 = vld [vmem:[%s176] sm:$0x3]
      %179 = vrot.lane.b32.xlu0 %v174, 124
      %v180 = vpop.permute.xlu0 %179
      %vm181 = vcmask 31744
      %v183 = vsel %vm181, %v180, 0
      %vm185 = vcmask 1041408
      %v187 = vsel %vm185, %v177, 0
      %189 = vmatprep.subr.bf16.mxu0 0
      %190 = vmatpush1.bf16.msra.mxu0 %v187
      %191 = vmatprep.subr.bf16.mxu0 0
      %192 = vmatpush1.bf16.msra.mxu0 0
      %193 = vmatprep.subr.bf16.mxu0 0
      %194 = vmatpush1.bf16.msra.mxu0 0
      %195 = vmatprep.subr.bf16.mxu0 0
      %196 = vmatpush1.bf16.msra.mxu0 0
      %197 = vmatprep.subr.bf16.mxu0 0
      %198 = vmatpush1.bf16.msra.mxu0 0
      %199 = vmatprep.subr.bf16.mxu0 0
      %200 = vmatpush1.bf16.msra.mxu0 0
      %201 = vmatprep.subr.bf16.mxu0 0
      %202 = vmatpush1.bf16.msra.mxu0 0
      %203 = vmatprep.subr.bf16.mxu0 0
      %204 = vmatpush1.bf16.msra.mxu0 0
      %205 = vmatprep.subr.bf16.mxu0 0
      %206 = vmatpush1.bf16.msra.mxu0 0
      %207 = vmatprep.subr.bf16.mxu0 0
      %208 = vmatpush1.bf16.msra.mxu0 0
      %209 = vmatprep.subr.bf16.mxu0 0
      %210 = vmatpush1.bf16.msra.mxu0 0
      %211 = vmatprep.subr.bf16.mxu0 0
      %212 = vmatpush1.bf16.msra.mxu0 0
      %213 = vmatprep.subr.bf16.mxu0 0
      %214 = vmatpush1.bf16.msra.mxu0 0
      %215 = vmatprep.subr.bf16.mxu0 0
      %216 = vmatpush1.bf16.msra.mxu0 0
      %217 = vmatprep.subr.bf16.mxu0 0
      %218 = vmatpush1.bf16.msra.mxu0 0
      %219 = vmatprep.subr.bf16.mxu0 0
      %220 = vmatpush1.bf16.msra.mxu0 0
      %221 = vmatprep.mubr.bf16.mxu0 0
      %222 = vmatmul.mubr.bf16.gmra.mrb[0].mxu0 %v183
      %v223 = vpop.f32.mrb[0].mxu0
      %v224 = vadd.f32 0.0, %v223
      %v225 = vpop.f32.mrb[0].mxu0
      %v226 = vpop.f32.mrb[0].mxu0
      %v227 = vadd.f32 0.0, %v226
      %v228 = vpop.f32.mrb[0].mxu0
      %229 = vdwg.mxu0
      %v231 = vsel %vm181, %v174, 0
      %v234 = vsel %vm185, %v175, 0
      %236 = vmatprep.subr.bf16.mxu0 0
      %237 = vmatpush1.bf16.msra.mxu0 %v234
      %238 = vmatprep.subr.bf16.mxu0 0
      %239 = vmatpush1.bf16.msra.mxu0 0
      %240 = vmatprep.subr.bf16.mxu0 0
      %241 = vmatpush1.bf16.msra.mxu0 0
      %242 = vmatprep.subr.bf16.mxu0 0
      %243 = vmatpush1.bf16.msra.mxu0 0
      %244 = vmatprep.subr.bf16.mxu0 0
      %245 = vmatpush1.bf16.msra.mxu0 0
      %246 = vmatprep.subr.bf16.mxu0 0
      %247 = vmatpush1.bf16.msra.mxu0 0
      %248 = vmatprep.subr.bf16.mxu0 0
      %249 = vmatpush1.bf16.msra.mxu0 0
      %250 = vmatprep.subr.bf16.mxu0 0
      %251 = vmatpush1.bf16.msra.mxu0 0
      %252 = vmatprep.subr.bf16.mxu0 0
      %253 = vmatpush1.bf16.msra.mxu0 0
      %254 = vmatprep.subr.bf16.mxu0 0
      %255 = vmatpush1.bf16.msra.mxu0 0
      %256 = vmatprep.subr.bf16.mxu0 0
      %257 = vmatpush1.bf16.msra.mxu0 0
      %258 = vmatprep.subr.bf16.mxu0 0
      %259 = vmatpush1.bf16.msra.mxu0 0
      %260 = vmatprep.subr.bf16.mxu0 0
      %261 = vmatpush1.bf16.msra.mxu0 0
      %262 = vmatprep.subr.bf16.mxu0 0
      %263 = vmatpush1.bf16.msra.mxu0 0
      %264 = vmatprep.subr.bf16.mxu0 0
      %265 = vmatpush1.bf16.msra.mxu0 0
      %266 = vmatprep.subr.bf16.mxu0 0
      %267 = vmatpush1.bf16.msra.mxu0 0
      %268 = vmatprep.mubr.bf16.mxu0 0
      %269 = vmatmul.mubr.bf16.gmra.mrb[0].mxu0 %v231
      %v270 = vpop.f32.mrb[0].mxu0
      %v271 = vadd.f32 %v224, %v270
      %v272 = vpop.f32.mrb[0].mxu0
      %v273 = vpop.f32.mrb[0].mxu0
      %v274 = vadd.f32 %v227, %v273
      %v275 = vpop.f32.mrb[0].mxu0
      %276 = vdwg.mxu0
      %s277 = scalar_lea.vmem %s1, 4
      %v278 = vld [vmem:[%s277] sm:$0x3]
      %v279 = vshrl.u32 %v174, 16
      %v281 = vshll.u32 %v174, 16
      %v283 = vrot.slane %v281, 1
      %v284 = vor.u32 %v279, %v283
      %v286 = vsel %vm181, %v284, 0
      %v289 = vsel %vm185, %v278, 0
      %291 = vmatprep.subr.bf16.mxu0 0
      %292 = vmatpush1.bf16.msra.mxu0 %v289
      %293 = vmatprep.subr.bf16.mxu0 0
      %294 = vmatpush1.bf16.msra.mxu0 0
      %295 = vmatprep.subr.bf16.mxu0 0
      %296 = vmatpush1.bf16.msra.mxu0 0
      %297 = vmatprep.subr.bf16.mxu0 0
      %298 = vmatpush1.bf16.msra.mxu0 0
      %299 = vmatprep.subr.bf16.mxu0 0
      %300 = vmatpush1.bf16.msra.mxu0 0
      %301 = vmatprep.subr.bf16.mxu0 0
      %302 = vmatpush1.bf16.msra.mxu0 0
      %303 = vmatprep.subr.bf16.mxu0 0
      %304 = vmatpush1.bf16.msra.mxu0 0
      %305 = vmatprep.subr.bf16.mxu0 0
      %306 = vmatpush1.bf16.msra.mxu0 0
      %307 = vmatprep.subr.bf16.mxu0 0
      %308 = vmatpush1.bf16.msra.mxu0 0
      %309 = vmatprep.subr.bf16.mxu0 0
      %310 = vmatpush1.bf16.msra.mxu0 0
      %311 = vmatprep.subr.bf16.mxu0 0
      %312 = vmatpush1.bf16.msra.mxu0 0
      %313 = vmatprep.subr.bf16.mxu0 0
      %314 = vmatpush1.bf16.msra.mxu0 0
      %315 = vmatprep.subr.bf16.mxu0 0
      %316 = vmatpush1.bf16.msra.mxu0 0
      %317 = vmatprep.subr.bf16.mxu0 0
      %318 = vmatpush1.bf16.msra.mxu0 0
      %319 = vmatprep.subr.bf16.mxu0 0
      %320 = vmatpush1.bf16.msra.mxu0 0
      %321 = vmatprep.subr.bf16.mxu0 0
      %322 = vmatpush1.bf16.msra.mxu0 0
      %323 = vmatprep.mubr.bf16.mxu0 0
      %324 = vmatmul.mubr.bf16.gmra.mrb[0].mxu0 %v286
      %v325 = vpop.f32.mrb[0].mxu0
      %v326 = vadd.f32 0.0, %v325
      %v327 = vpop.f32.mrb[0].mxu0
      %v328 = vpop.f32.mrb[0].mxu0
      %v329 = vadd.f32 0.0, %v328
      %v330 = vpop.f32.mrb[0].mxu0
      %331 = vdwg.mxu0
      %v332 = vadd.f32 %v271, %v326
      %v333 = vadd.f32 %v274, %v329
      %v334 = vld [vmem:[%s2] sm:$0x1]
      %v336 = vlaneseq
      %v337 = vshrl.u32 %v336, 7
      %v338 = vsub.s32 0, %v337
      %v339 = vrot.slane %v334, %v338
      %v341 = vadd.f32 %v332, %v339
      %v342 = vadd.f32 %v333, %v339
      %v343 = vmax.f32 %v341, 0.0
      %v344 = vmax.f32 %v342, 0.0
      %vm345 = vcmask 523264
      %346 = vst.msk [vmem:[%s170] sm:$0xff] %vm345, %v343
      %vm347 = vcmask 517120
      %348 = vst.msk [vmem:[%s170 + $0x8] sm:$0x3] %vm347, %v344
      %p349 = scmp.lt.s32.totalorder %s14, 1
      %s350 = scalar_select %p349, %s14, 1
      %s351 = smul.addr %s350, 2
      %s352 = smul.addr %s351, 8
      %s353 = scalar_lea.vmem %s3, %s352
      // Predicated region
      $region33: #{fft_conv_forward.6} parent=31 // pred_check
        %p354 = pneg %p100
      $region34: #{fft_conv_forward.6} parent=31 // pred_check_branch
        %356 = sbr.rel (%p354) target = $region36
      $region35: #{fft_conv_forward.6} parent=31 // pred_region
        _
      $region36: #{fft_conv_forward.6} parent=31 // pred_fallthru
        _
    $region32: #{fft_conv_forward.6} parent=5 // pred_fallthru
      _
    %p357 = scmp.le.s32.totalorder 2, %s9
    // Predicated region
    $region37: #{fft_conv_forward.6} parent=5 // pred_check
      %p358 = pneg %p357
    $region38: #{fft_conv_forward.6} parent=5 // pred_check_branch
      %360 = sbr.rel (%p358) target = $region40
    $region39: #{fft_conv_forward.6} parent=5 // pred_region
      %s361 = ssub.s32 %s9, 2
      // Predicated region
      $region41: #{fft_conv_forward.6} parent=39 // pred_check
        %p362 = pneg %p106
      $region42: #{fft_conv_forward.6} parent=39 // pred_check_branch
        %364 = sbr.rel (%p362) target = $region44
      $region43: #{fft_conv_forward.6} parent=39 // pred_region
        %p365 = scmp.lt.s32.totalorder %s15, 1
        %s366 = scalar_select %p365, %s15, 1
        %s367 = smul.addr %s366, 2
        %s368 = smul.addr %s367, 8
        %s369 = scalar_lea.vmem %s3, %s368
      $region44: #{fft_conv_forward.6} parent=39 // pred_fallthru
        _
    $region40: #{fft_conv_forward.6} parent=5 // pred_fallthru
      _
  $region6: #{fft_conv_forward.6} parent=0 // loop_footer
    %s13 = sadd.s32 1, %s9
  $region7: #{fft_conv_forward.6} parent=0 // loop_footer_branch
    %8 = sbr.rel target = $region3
  $region8: #{fft_conv_forward.6} parent=0 // loop_exit
    _

// kernel: fft_conv_forward.7
$region0: #{fft_conv_forward.7}
  #allocation0 [shape = 'u32[]', space=smem, size = 0x4, offset = 0x4, fixed_abs, tag = 'smem constant byte address 0x4 - core index']
  #allocation1 [shape = 'u32[144,128]{1,0:T(1,128)}', space=vmem, size = 0x12000, scoped, tag = 'internal scratch']
  %s0 = inlined_call_operand.vmem [shape: f32[2,6,128], index: 0, kind: input, shape index: {}]
  %s1 = inlined_call_operand.vmem [shape: bf16[3,64,64], index: 1, kind: input, shape index: {}]
  %s2 = inlined_call_operand.vmem [shape: f32[1,64], index: 2, kind: input, shape index: {}]
  %s3 = inlined_call_operand.vmem [shape: f32[2,5,64], index: 3, kind: output, shape index: {}]
  %s4 = sld [smem:[#allocation0]]
  $region45: #{fft_conv_forward.7} parent=0
    _
  %s6 = ssub.s32 1, %s4
  %s7 = scalar_select 0, %s6, %s4
  loop: start=0, step=1, limit=4
  $region2: #{fft_conv_forward.7} parent=0 // loop_pre_header
    _
  $region3: #{fft_conv_forward.7} parent=0 // loop_header
    %s9 = sphi 0, %s13
    %p10 = scmp.ge.s32.totalorder %s9, 4
    %s19 = sphi 0, %s21
    %s22 = sphi 0, %s19
    %s23 = sphi 0, %s22
    %s39 = sphi 0, %s23
    %s43 = sphi 0, %s43
    %s45 = sphi 0, %s43
    %s46 = sphi 0, %s45
    %s60 = sphi 0, %s46
    %s64 = sphi 0, %s64
    %s66 = sphi 0, %s64
    %s67 = sphi 0, %s66
    %s81 = sphi 0, %s67
    %s87 = sphi 0, %s89
    %s90 = sphi 0, %s87
    %s91 = sphi 0, %s90
    %s107 = sphi 0, %s91
  $region4: #{fft_conv_forward.7} parent=0 // loop_header_branch
    %12 = sbr.rel (%p10) target = $region8
  $region5: #{fft_conv_forward.7} parent=0 // loop_body
    %s14 = ssub.s32 %s9, 1
    %s15 = ssub.s32 %s9, 2
    %s16 = sadd.s32 %s9, 1
    %s17 = ssub.s32 %s9, %s16
    %p18 = scmp.eq.s32.totalorder %s17, 0
    %s20 = sadd.s32 %s19, 1
    %s21 = scalar_select %p18, %s19, %s20
    %p24 = pneg %p18
    %p25 = scmp.eq.s32.totalorder %s9, 1
    %p26 = por %p24, %p25
    %p27 = scmp.ne.s32.totalorder %s19, %s22
    %p28 = scmp.eq.s32.totalorder %s9, 0
    %p29 = por %p27, %p28
    %p30 = scmp.ne.s32.totalorder %s19, %s22
    %p31 = scmp.eq.s32.totalorder %s14, 1
    %p32 = por %p30, %p31
    %p33 = scmp.ne.s32.totalorder %s22, %s23
    %p34 = scmp.eq.s32.totalorder %s14, 0
    %p35 = por %p33, %p34
    %p36 = scmp.ne.s32.totalorder %s22, %s23
    %p37 = scmp.eq.s32.totalorder %s15, 1
    %p38 = por %p36, %p37
    %p40 = scmp.ne.s32.totalorder %s23, %s39
    %p41 = scmp.eq.s32.totalorder %s15, 0
    %p42 = por %p40, %p41
    %s44 = sadd.s32 %s43, 1
    %p47 = scmp.eq.s32.totalorder %s9, 1
    %p48 = scmp.ne.s32.totalorder %s43, %s45
    %p49 = scmp.eq.s32.totalorder %s9, 0
    %p50 = por %p48, %p49
    %p51 = scmp.ne.s32.totalorder %s43, %s45
    %p52 = scmp.eq.s32.totalorder %s14, 1
    %p53 = por %p51, %p52
    %p54 = scmp.ne.s32.totalorder %s45, %s46
    %p55 = scmp.eq.s32.totalorder %s14, 0
    %p56 = por %p54, %p55
    %p57 = scmp.ne.s32.totalorder %s45, %s46
    %p58 = scmp.eq.s32.totalorder %s15, 1
    %p59 = por %p57, %p58
    %p61 = scmp.ne.s32.totalorder %s46, %s60
    %p62 = scmp.eq.s32.totalorder %s15, 0
    %p63 = por %p61, %p62
    %s65 = sadd.s32 %s64, 1
    %p68 = scmp.eq.s32.totalorder %s9, 1
    %p69 = scmp.ne.s32.totalorder %s64, %s66
    %p70 = scmp.eq.s32.totalorder %s9, 0
    %p71 = por %p69, %p70
    %p72 = scmp.ne.s32.totalorder %s64, %s66
    %p73 = scmp.eq.s32.totalorder %s14, 1
    %p74 = por %p72, %p73
    %p75 = scmp.ne.s32.totalorder %s66, %s67
    %p76 = scmp.eq.s32.totalorder %s14, 0
    %p77 = por %p75, %p76
    %p78 = scmp.ne.s32.totalorder %s66, %s67
    %p79 = scmp.eq.s32.totalorder %s15, 1
    %p80 = por %p78, %p79
    %p82 = scmp.ne.s32.totalorder %s67, %s81
    %p83 = scmp.eq.s32.totalorder %s15, 0
    %p84 = por %p82, %p83
    %s85 = ssub.s32 %s9, %s16
    %p86 = scmp.eq.s32.totalorder %s85, 0
    %s88 = sadd.s32 %s87, 1
    %s89 = scalar_select %p86, %s87, %s88
    %p92 = pneg %p86
    %p93 = scmp.eq.s32.totalorder %s9, 1
    %p94 = por %p92, %p93
    %p95 = scmp.ne.s32.totalorder %s87, %s90
    %p96 = scmp.eq.s32.totalorder %s9, 0
    %p97 = por %p95, %p96
    %p98 = scmp.ne.s32.totalorder %s87, %s90
    %p99 = scmp.eq.s32.totalorder %s14, 1
    %p100 = por %p98, %p99
    %p101 = scmp.ne.s32.totalorder %s90, %s91
    %p102 = scmp.eq.s32.totalorder %s14, 0
    %p103 = por %p101, %p102
    %p104 = scmp.ne.s32.totalorder %s90, %s91
    %p105 = scmp.eq.s32.totalorder %s15, 1
    %p106 = por %p104, %p105
    %p108 = scmp.ne.s32.totalorder %s91, %s107
    %p109 = scmp.eq.s32.totalorder %s15, 0
    %p110 = por %p108, %p109
    %p111 = scmp.le.s32.totalorder 1, %s9
    %p112 = scmp.lt.s32.totalorder %s9, 3
    %p113 = pnand %p111, %p112
    %p114 = pneg %p113
    // Predicated region
    $region9: #{fft_conv_forward.7} parent=5 // pred_check
      _
    $region10: #{fft_conv_forward.7} parent=5 // pred_check_branch
      %116 = sbr.rel (%p113) target = $region12
    $region11: #{fft_conv_forward.7} parent=5 // pred_region
      %s117 = ssub.s32 %s9, 1
      // Predicated region
      $region13: #{fft_conv_forward.7} parent=11 // pred_check
        %p118 = pneg %p56
      $region14: #{fft_conv_forward.7} parent=11 // pred_check_branch
        %120 = sbr.rel (%p118) target = $region16
      $region15: #{fft_conv_forward.7} parent=11 // pred_region
        _
      $region16: #{fft_conv_forward.7} parent=11 // pred_fallthru
        _
      // Predicated region
      $region17: #{fft_conv_forward.7} parent=11 // pred_check
        %p121 = pneg %p77
      $region18: #{fft_conv_forward.7} parent=11 // pred_check_branch
        %123 = sbr.rel (%p121) target = $region20
      $region19: #{fft_conv_forward.7} parent=11 // pred_region
        _
      $region20: #{fft_conv_forward.7} parent=11 // pred_fallthru
        _
    $region12: #{fft_conv_forward.7} parent=5 // pred_fallthru
      _
    %p124 = scmp.lt.s32.totalorder %s9, 2
    // Predicated region
    $region21: #{fft_conv_forward.7} parent=5 // pred_check
      %p125 = pneg %p124
    $region22: #{fft_conv_forward.7} parent=5 // pred_check_branch
      %127 = sbr.rel (%p125) target = $region24
    $region23: #{fft_conv_forward.7} parent=5 // pred_region
      // Predicated region
      $region25: #{fft_conv_forward.7} parent=23 // pred_check
        %p128 = pneg %p29
      $region26: #{fft_conv_forward.7} parent=23 // pred_check_branch
        %130 = sbr.rel (%p128) target = $region28
      $region27: #{fft_conv_forward.7} parent=23 // pred_region
        %p131 = scmp.lt.s32.totalorder %s9, 1
        %s132 = scalar_select %p131, %s9, 1
        %s133 = smul.addr %s132, 8
        %s134 = scalar_lea.vmem %s0, %s133
      $region28: #{fft_conv_forward.7} parent=23 // pred_fallthru
        _
    $region24: #{fft_conv_forward.7} parent=5 // pred_fallthru
      _
    %p135 = scmp.le.s32.totalorder 1, %s9
    %p136 = scmp.lt.s32.totalorder %s9, 3
    %p137 = pnand %p135, %p136
    %p138 = pneg %p137
    // Predicated region
    $region29: #{fft_conv_forward.7} parent=5 // pred_check
      _
    $region30: #{fft_conv_forward.7} parent=5 // pred_check_branch
      %140 = sbr.rel (%p137) target = $region32
    $region31: #{fft_conv_forward.7} parent=5 // pred_region
      %s141 = ssub.s32 %s9, 1
      %p142 = scmp.lt.s32.totalorder %s14, 1
      %s143 = scalar_select %p142, %s14, 1
      %s144 = smul.addr %s143, 8
      %s145 = scalar_lea.vmem %s0, %s144
      %p146 = pneg %p35
      %p147 = pneg %p32
      %p148 = pneg %p56
      %p149 = pneg %p53
      %p150 = pneg %p77
      %p151 = pneg %p74
      %p152 = pneg %p103
      %p153 = pneg %p100
      %p154 = scmp.lt.s32.totalorder %s14, 1
      %s155 = scalar_select %p154, %s14, 1
      %s156 = smul.addr %s155, 8
      %s157 = scalar_lea.vmem %s3, %s156
      %p158 = scmp.lt.s32.totalorder %s14, 1
      %s159 = scalar_select %p158, %s14, 1
      %s160 = smul.addr %s159, 8
      %s161 = scalar_lea.vmem %s0, %s160
      %p162 = scmp.lt.s32.totalorder %s14, 1
      %s163 = scalar_select %p162, %s14, 1
      %s164 = smul.addr %s163, 8
      %s165 = scalar_lea.vmem %s3, %s164
      %v167 = vld [vmem:[%s161] sm:$0x3f]
      %v168 = vpack.c.bf16 %v167, %v167
      %v169 = vld [vmem:[%s1] sm:$0xf]
      %v170 = vld [vmem:[%s1 + $0x4] sm:$0xf]
      %v171 = vld [vmem:[%s1 + $0x8] sm:$0xf]
      %v172 = vld [vmem:[%s1 + $0xc] sm:$0xf]
      %v173 = vld [vmem:[%s1 + $0x10] sm:$0xf]
      %v174 = vld [vmem:[%s1 + $0x14] sm:$0xf]
      %v175 = vld [vmem:[%s1 + $0x18] sm:$0xf]
      %v176 = vld [vmem:[%s1 + $0x1c] sm:$0xf]
      %s177 = scalar_lea.vmem %s1, 32
      %v178 = vld [vmem:[%s177] sm:$0xf]
      %v179 = vld [vmem:[%s177 + $0x4] sm:$0xf]
      %v180 = vld [vmem:[%s177 + $0x8] sm:$0xf]
      %v181 = vld [vmem:[%s177 + $0xc] sm:$0xf]
      %v182 = vld [vmem:[%s177 + $0x10] sm:$0xf]
      %v183 = vld [vmem:[%s177 + $0x14] sm:$0xf]
      %v184 = vld [vmem:[%s177 + $0x18] sm:$0xf]
      %v185 = vld [vmem:[%s177 + $0x1c] sm:$0xf]
      %187 = vrot.lane.b32.xlu0 %v168, 64
      %v188 = vpop.permute.xlu0 %187
      %v197 = vunpack.c.l.b16 %v178
      %v198 = vunpack.c.l.b16 %v179
      %v199 = vunpack.c.l.b16 %v180
      %v200 = vunpack.c.l.b16 %v181
      %v201 = vunpack.c.l.b16 %v182
      %v202 = vunpack.c.l.b16 %v183
      %v203 = vunpack.c.l.b16 %v184
      %v204 = vunpack.c.l.b16 %v185
      %v205 = vpack.c.b16 %v198, %v197
      %v206 = vpack.c.b16 %v200, %v199
      %v207 = vpack.c.b16 %v202, %v201
      %v208 = vpack.c.b16 %v204, %v203
      %vm213 = vcmask 523264
      %v215 = vsel %vm213, %v188, 0
      %217 = vmatprep.subr.bf16.mxu0 0
      %218 = vmatpush1.bf16.msra.mxu0 %v205
      %219 = vmatprep.subr.bf16.mxu0 0
      %220 = vmatpush1.bf16.msra.mxu0 %v206
      %221 = vmatprep.subr.bf16.mxu0 0
      %222 = vmatpush1.bf16.msra.mxu0 %v207
      %223 = vmatprep.subr.bf16.mxu0 0
      %224 = vmatpush1.bf16.msra.mxu0 %v208
      %225 = vmatprep.subr.bf16.mxu0 0
      %226 = vmatpush1.bf16.msra.mxu0 0
      %227 = vmatprep.subr.bf16.mxu0 0
      %228 = vmatpush1.bf16.msra.mxu0 0
      %229 = vmatprep.subr.bf16.mxu0 0
      %230 = vmatpush1.bf16.msra.mxu0 0
      %231 = vmatprep.subr.bf16.mxu0 0
      %232 = vmatpush1.bf16.msra.mxu0 0
      %233 = vmatprep.subr.bf16.mxu0 0
      %234 = vmatpush1.bf16.msra.mxu0 0
      %235 = vmatprep.subr.bf16.mxu0 0
      %236 = vmatpush1.bf16.msra.mxu0 0
      %237 = vmatprep.subr.bf16.mxu0 0
      %238 = vmatpush1.bf16.msra.mxu0 0
      %239 = vmatprep.subr.bf16.mxu0 0
      %240 = vmatpush1.bf16.msra.mxu0 0
      %241 = vmatprep.subr.bf16.mxu0 0
      %242 = vmatpush1.bf16.msra.mxu0 0
      %243 = vmatprep.subr.bf16.mxu0 0
      %244 = vmatpush1.bf16.msra.mxu0 0
      %245 = vmatprep.subr.bf16.mxu0 0
      %246 = vmatpush1.bf16.msra.mxu0 0
      %247 = vmatprep.subr.bf16.mxu0 0
      %248 = vmatpush1.bf16.msra.mxu0 0
      %249 = vmatprep.mubr.bf16.mxu0 0
      %250 = vmatmul.mubr.bf16.gmra.mrb[0].mxu0 %v215
      %v251 = vpop.f32.mrb[0].mxu0
      %v252 = vadd.f32 0.0, %v251
      %v253 = vpop.f32.mrb[0].mxu0
      %v254 = vpop.f32.mrb[0].mxu0
      %v255 = vpop.f32.mrb[0].mxu0
      %256 = vdwg.mxu0
      %v265 = vunpack.c.l.b16 %v169
      %v266 = vunpack.c.l.b16 %v170
      %v267 = vunpack.c.l.b16 %v171
      %v268 = vunpack.c.l.b16 %v172
      %v269 = vunpack.c.l.b16 %v173
      %v270 = vunpack.c.l.b16 %v174
      %v271 = vunpack.c.l.b16 %v175
      %v272 = vunpack.c.l.b16 %v176
      %v273 = vpack.c.b16 %v266, %v265
      %v274 = vpack.c.b16 %v268, %v267
      %v275 = vpack.c.b16 %v270, %v269
      %v276 = vpack.c.b16 %v272, %v271
      %v282 = vsel %vm213, %v168, 0
      %284 = vmatprep.subr.bf16.mxu0 0
      %285 = vmatpush1.bf16.msra.mxu0 %v273
      %286 = vmatprep.subr.bf16.mxu0 0
      %287 = vmatpush1.bf16.msra.mxu0 %v274
      %288 = vmatprep.subr.bf16.mxu0 0
      %289 = vmatpush1.bf16.msra.mxu0 %v275
      %290 = vmatprep.subr.bf16.mxu0 0
      %291 = vmatpush1.bf16.msra.mxu0 %v276
      %292 = vmatprep.subr.bf16.mxu0 0
      %293 = vmatpush1.bf16.msra.mxu0 0
      %294 = vmatprep.subr.bf16.mxu0 0
      %295 = vmatpush1.bf16.msra.mxu0 0
      %296 = vmatprep.subr.bf16.mxu0 0
      %297 = vmatpush1.bf16.msra.mxu0 0
      %298 = vmatprep.subr.bf16.mxu0 0
      %299 = vmatpush1.bf16.msra.mxu0 0
      %300 = vmatprep.subr.bf16.mxu0 0
      %301 = vmatpush1.bf16.msra.mxu0 0
      %302 = vmatprep.subr.bf16.mxu0 0
      %303 = vmatpush1.bf16.msra.mxu0 0
      %304 = vmatprep.subr.bf16.mxu0 0
      %305 = vmatpush1.bf16.msra.mxu0 0
      %306 = vmatprep.subr.bf16.mxu0 0
      %307 = vmatpush1.bf16.msra.mxu0 0
      %308 = vmatprep.subr.bf16.mxu0 0
      %309 = vmatpush1.bf16.msra.mxu0 0
      %310 = vmatprep.subr.bf16.mxu0 0
      %311 = vmatpush1.bf16.msra.mxu0 0
      %312 = vmatprep.subr.bf16.mxu0 0
      %313 = vmatpush1.bf16.msra.mxu0 0
      %314 = vmatprep.subr.bf16.mxu0 0
      %315 = vmatpush1.bf16.msra.mxu0 0
      %316 = vmatprep.mubr.bf16.mxu0 0
      %317 = vmatmul.mubr.bf16.gmra.mrb[0].mxu0 %v282
      %v318 = vpop.f32.mrb[0].mxu0
      %v319 = vadd.f32 %v252, %v318
      %v320 = vpop.f32.mrb[0].mxu0
      %v321 = vpop.f32.mrb[0].mxu0
      %v322 = vpop.f32.mrb[0].mxu0
      %323 = vdwg.mxu0
      %s324 = scalar_lea.vmem %s1, 64
      %v325 = vld [vmem:[%s324] sm:$0xf]
      %v326 = vld [vmem:[%s324 + $0x4] sm:$0xf]
      %v327 = vld [vmem:[%s324 + $0x8] sm:$0xf]
      %v328 = vld [vmem:[%s324 + $0xc] sm:$0xf]
      %v329 = vld [vmem:[%s324 + $0x10] sm:$0xf]
      %v330 = vld [vmem:[%s324 + $0x14] sm:$0xf]
      %v331 = vld [vmem:[%s324 + $0x18] sm:$0xf]
      %v332 = vld [vmem:[%s324 + $0x1c] sm:$0xf]
      %v333 = vshrl.u32 %v168, 16
      %v335 = vshll.u32 %v168, 16
      %v337 = vrot.slane %v335, 1
      %v338 = vor.u32 %v333, %v337
      %v347 = vunpack.c.l.b16 %v325
      %v348 = vunpack.c.l.b16 %v326
      %v349 = vunpack.c.l.b16 %v327
      %v350 = vunpack.c.l.b16 %v328
      %v351 = vunpack.c.l.b16 %v329
      %v352 = vunpack.c.l.b16 %v330
      %v353 = vunpack.c.l.b16 %v331
      %v354 = vunpack.c.l.b16 %v332
      %v355 = vpack.c.b16 %v348, %v347
      %v356 = vpack.c.b16 %v350, %v349
      %v357 = vpack.c.b16 %v352, %v351
      %v358 = vpack.c.b16 %v354, %v353
      %v364 = vsel %vm213, %v338, 0
      %366 = vmatprep.subr.bf16.mxu0 0
      %367 = vmatpush1.bf16.msra.mxu0 %v355
      %368 = vmatprep.subr.bf16.mxu0 0
      %369 = vmatpush1.bf16.msra.mxu0 %v356
      %370 = vmatprep.subr.bf16.mxu0 0
      %371 = vmatpush1.bf16.msra.mxu0 %v357
      %372 = vmatprep.subr.bf16.mxu0 0
      %373 = vmatpush1.bf16.msra.mxu0 %v358
      %374 = vmatprep.subr.bf16.mxu0 0
      %375 = vmatpush1.bf16.msra.mxu0 0
      %376 = vmatprep.subr.bf16.mxu0 0
      %377 = vmatpush1.bf16.msra.mxu0 0
      %378 = vmatprep.subr.bf16.mxu0 0
      %379 = vmatpush1.bf16.msra.mxu0 0
      %380 = vmatprep.subr.bf16.mxu0 0
      %381 = vmatpush1.bf16.msra.mxu0 0
      %382 = vmatprep.subr.bf16.mxu0 0
      %383 = vmatpush1.bf16.msra.mxu0 0
      %384 = vmatprep.subr.bf16.mxu0 0
      %385 = vmatpush1.bf16.msra.mxu0 0
      %386 = vmatprep.subr.bf16.mxu0 0
      %387 = vmatpush1.bf16.msra.mxu0 0
      %388 = vmatprep.subr.bf16.mxu0 0
      %389 = vmatpush1.bf16.msra.mxu0 0
      %390 = vmatprep.subr.bf16.mxu0 0
      %391 = vmatpush1.bf16.msra.mxu0 0
      %392 = vmatprep.subr.bf16.mxu0 0
      %393 = vmatpush1.bf16.msra.mxu0 0
      %394 = vmatprep.subr.bf16.mxu0 0
      %395 = vmatpush1.bf16.msra.mxu0 0
      %396 = vmatprep.subr.bf16.mxu0 0
      %397 = vmatpush1.bf16.msra.mxu0 0
      %398 = vmatprep.mubr.bf16.mxu0 0
      %399 = vmatmul.mubr.bf16.gmra.mrb[0].mxu0 %v364
      %v400 = vpop.f32.mrb[0].mxu0
      %v401 = vadd.f32 0.0, %v400
      %v402 = vpop.f32.mrb[0].mxu0
      %v403 = vpop.f32.mrb[0].mxu0
      %v404 = vpop.f32.mrb[0].mxu0
      %405 = vdwg.mxu0
      %v406 = vadd.f32 %v319, %v401
      %v407 = vld [vmem:[%s2] sm:$0x1]
      %v409 = vlaneseq
      %v410 = vshrl.u32 %v409, 7
      %v411 = vsub.s32 0, %v410
      %v412 = vrot.slane %v407, %v411
      %v414 = vadd.f32 %v406, %v412
      %v415 = vmax.f32 %v414, 0.0
      %vm416 = vcmask 520192
      %417 = vst.msk [vmem:[%s165] sm:$0x1f] %vm416, %v415
      %p418 = scmp.lt.s32.totalorder %s14, 1
      %s419 = scalar_select %p418, %s14, 1
      %s420 = smul.addr %s419, 8
      %s421 = scalar_lea.vmem %s3, %s420
      // Predicated region
      $region33: #{fft_conv_forward.7} parent=31 // pred_check
        %p422 = pneg %p100
      $region34: #{fft_conv_forward.7} parent=31 // pred_check_branch
        %424 = sbr.rel (%p422) target = $region36
      $region35: #{fft_conv_forward.7} parent=31 // pred_region
        _
      $region36: #{fft_conv_forward.7} parent=31 // pred_fallthru
        _
    $region32: #{fft_conv_forward.7} parent=5 // pred_fallthru
      _
    %p425 = scmp.le.s32.totalorder 2, %s9
    // Predicated region
    $region37: #{fft_conv_forward.7} parent=5 // pred_check
      %p426 = pneg %p425
    $region38: #{fft_conv_forward.7} parent=5 // pred_check_branch
      %428 = sbr.rel (%p426) target = $region40
    $region39: #{fft_conv_forward.7} parent=5 // pred_region
      %s429 = ssub.s32 %s9, 2
      // Predicated region
      $region41: #{fft_conv_forward.7} parent=39 // pred_check
        %p430 = pneg %p106
      $region42: #{fft_conv_forward.7} parent=39 // pred_check_branch
        %432 = sbr.rel (%p430) target = $region44
      $region43: #{fft_conv_forward.7} parent=39 // pred_region
        %p433 = scmp.lt.s32.totalorder %s15, 1
        %s434 = scalar_select %p433, %s15, 1
        %s435 = smul.addr %s434, 8
        %s436 = scalar_lea.vmem %s3, %s435
      $region44: #{fft_conv_forward.7} parent=39 // pred_fallthru
        _
    $region40: #{fft_conv_forward.7} parent=5 // pred_fallthru
      _
  $region6: #{fft_conv_forward.7} parent=0 // loop_footer
    %s13 = sadd.s32 1, %s9
  $region7: #{fft_conv_forward.7} parent=0 // loop_footer_branch
    %8 = sbr.rel target = $region3
  $region8: #{fft_conv_forward.7} parent=0 // loop_exit
    _

// kernel: fft_conv_forward.8
$region0: #{fft_conv_forward.8}
  #allocation0 [shape = 'u32[]', space=smem, size = 0x4, offset = 0x4, fixed_abs, tag = 'smem constant byte address 0x4 - core index']
  #allocation1 [shape = 'u32[144,128]{1,0:T(1,128)}', space=vmem, size = 0x12000, scoped, tag = 'internal scratch']
  %s0 = inlined_call_operand.vmem [shape: f32[2,5,128], index: 0, kind: input, shape index: {}]
  %s1 = inlined_call_operand.vmem [shape: bf16[5,64,32], index: 1, kind: input, shape index: {}]
  %s2 = inlined_call_operand.vmem [shape: f32[1,32], index: 2, kind: input, shape index: {}]
  %s3 = inlined_call_operand.vmem [shape: f32[2,3,32], index: 3, kind: output, shape index: {}]
  %s4 = sld [smem:[#allocation0]]
  $region45: #{fft_conv_forward.8} parent=0
    _
  %s6 = ssub.s32 1, %s4
  %s7 = scalar_select 0, %s6, %s4
  loop: start=0, step=1, limit=4
  $region2: #{fft_conv_forward.8} parent=0 // loop_pre_header
    _
  $region3: #{fft_conv_forward.8} parent=0 // loop_header
    %s9 = sphi 0, %s13
    %p10 = scmp.ge.s32.totalorder %s9, 4
    %s19 = sphi 0, %s21
    %s22 = sphi 0, %s19
    %s23 = sphi 0, %s22
    %s39 = sphi 0, %s23
    %s43 = sphi 0, %s43
    %s45 = sphi 0, %s43
    %s46 = sphi 0, %s45
    %s60 = sphi 0, %s46
    %s64 = sphi 0, %s64
    %s66 = sphi 0, %s64
    %s67 = sphi 0, %s66
    %s81 = sphi 0, %s67
    %s87 = sphi 0, %s89
    %s90 = sphi 0, %s87
    %s91 = sphi 0, %s90
    %s107 = sphi 0, %s91
  $region4: #{fft_conv_forward.8} parent=0 // loop_header_branch
    %12 = sbr.rel (%p10) target = $region8
  $region5: #{fft_conv_forward.8} parent=0 // loop_body
    %s14 = ssub.s32 %s9, 1
    %s15 = ssub.s32 %s9, 2
    %s16 = sadd.s32 %s9, 1
    %s17 = ssub.s32 %s9, %s16
    %p18 = scmp.eq.s32.totalorder %s17, 0
    %s20 = sadd.s32 %s19, 1
    %s21 = scalar_select %p18, %s19, %s20
    %p24 = pneg %p18
    %p25 = scmp.eq.s32.totalorder %s9, 1
    %p26 = por %p24, %p25
    %p27 = scmp.ne.s32.totalorder %s19, %s22
    %p28 = scmp.eq.s32.totalorder %s9, 0
    %p29 = por %p27, %p28
    %p30 = scmp.ne.s32.totalorder %s19, %s22
    %p31 = scmp.eq.s32.totalorder %s14, 1
    %p32 = por %p30, %p31
    %p33 = scmp.ne.s32.totalorder %s22, %s23
    %p34 = scmp.eq.s32.totalorder %s14, 0
    %p35 = por %p33, %p34
    %p36 = scmp.ne.s32.totalorder %s22, %s23
    %p37 = scmp.eq.s32.totalorder %s15, 1
    %p38 = por %p36, %p37
    %p40 = scmp.ne.s32.totalorder %s23, %s39
    %p41 = scmp.eq.s32.totalorder %s15, 0
    %p42 = por %p40, %p41
    %s44 = sadd.s32 %s43, 1
    %p47 = scmp.eq.s32.totalorder %s9, 1
    %p48 = scmp.ne.s32.totalorder %s43, %s45
    %p49 = scmp.eq.s32.totalorder %s9, 0
    %p50 = por %p48, %p49
    %p51 = scmp.ne.s32.totalorder %s43, %s45
    %p52 = scmp.eq.s32.totalorder %s14, 1
    %p53 = por %p51, %p52
    %p54 = scmp.ne.s32.totalorder %s45, %s46
    %p55 = scmp.eq.s32.totalorder %s14, 0
    %p56 = por %p54, %p55
    %p57 = scmp.ne.s32.totalorder %s45, %s46
    %p58 = scmp.eq.s32.totalorder %s15, 1
    %p59 = por %p57, %p58
    %p61 = scmp.ne.s32.totalorder %s46, %s60
    %p62 = scmp.eq.s32.totalorder %s15, 0
    %p63 = por %p61, %p62
    %s65 = sadd.s32 %s64, 1
    %p68 = scmp.eq.s32.totalorder %s9, 1
    %p69 = scmp.ne.s32.totalorder %s64, %s66
    %p70 = scmp.eq.s32.totalorder %s9, 0
    %p71 = por %p69, %p70
    %p72 = scmp.ne.s32.totalorder %s64, %s66
    %p73 = scmp.eq.s32.totalorder %s14, 1
    %p74 = por %p72, %p73
    %p75 = scmp.ne.s32.totalorder %s66, %s67
    %p76 = scmp.eq.s32.totalorder %s14, 0
    %p77 = por %p75, %p76
    %p78 = scmp.ne.s32.totalorder %s66, %s67
    %p79 = scmp.eq.s32.totalorder %s15, 1
    %p80 = por %p78, %p79
    %p82 = scmp.ne.s32.totalorder %s67, %s81
    %p83 = scmp.eq.s32.totalorder %s15, 0
    %p84 = por %p82, %p83
    %s85 = ssub.s32 %s9, %s16
    %p86 = scmp.eq.s32.totalorder %s85, 0
    %s88 = sadd.s32 %s87, 1
    %s89 = scalar_select %p86, %s87, %s88
    %p92 = pneg %p86
    %p93 = scmp.eq.s32.totalorder %s9, 1
    %p94 = por %p92, %p93
    %p95 = scmp.ne.s32.totalorder %s87, %s90
    %p96 = scmp.eq.s32.totalorder %s9, 0
    %p97 = por %p95, %p96
    %p98 = scmp.ne.s32.totalorder %s87, %s90
    %p99 = scmp.eq.s32.totalorder %s14, 1
    %p100 = por %p98, %p99
    %p101 = scmp.ne.s32.totalorder %s90, %s91
    %p102 = scmp.eq.s32.totalorder %s14, 0
    %p103 = por %p101, %p102
    %p104 = scmp.ne.s32.totalorder %s90, %s91
    %p105 = scmp.eq.s32.totalorder %s15, 1
    %p106 = por %p104, %p105
    %p108 = scmp.ne.s32.totalorder %s91, %s107
    %p109 = scmp.eq.s32.totalorder %s15, 0
    %p110 = por %p108, %p109
    %p111 = scmp.le.s32.totalorder 1, %s9
    %p112 = scmp.lt.s32.totalorder %s9, 3
    %p113 = pnand %p111, %p112
    %p114 = pneg %p113
    // Predicated region
    $region9: #{fft_conv_forward.8} parent=5 // pred_check
      _
    $region10: #{fft_conv_forward.8} parent=5 // pred_check_branch
      %116 = sbr.rel (%p113) target = $region12
    $region11: #{fft_conv_forward.8} parent=5 // pred_region
      %s117 = ssub.s32 %s9, 1
      // Predicated region
      $region13: #{fft_conv_forward.8} parent=11 // pred_check
        %p118 = pneg %p56
      $region14: #{fft_conv_forward.8} parent=11 // pred_check_branch
        %120 = sbr.rel (%p118) target = $region16
      $region15: #{fft_conv_forward.8} parent=11 // pred_region
        _
      $region16: #{fft_conv_forward.8} parent=11 // pred_fallthru
        _
      // Predicated region
      $region17: #{fft_conv_forward.8} parent=11 // pred_check
        %p121 = pneg %p77
      $region18: #{fft_conv_forward.8} parent=11 // pred_check_branch
        %123 = sbr.rel (%p121) target = $region20
      $region19: #{fft_conv_forward.8} parent=11 // pred_region
        _
      $region20: #{fft_conv_forward.8} parent=11 // pred_fallthru
        _
    $region12: #{fft_conv_forward.8} parent=5 // pred_fallthru
      _
    %p124 = scmp.lt.s32.totalorder %s9, 2
    // Predicated region
    $region21: #{fft_conv_forward.8} parent=5 // pred_check
      %p125 = pneg %p124
    $region22: #{fft_conv_forward.8} parent=5 // pred_check_branch
      %127 = sbr.rel (%p125) target = $region24
    $region23: #{fft_conv_forward.8} parent=5 // pred_region
      // Predicated region
      $region25: #{fft_conv_forward.8} parent=23 // pred_check
        %p128 = pneg %p29
      $region26: #{fft_conv_forward.8} parent=23 // pred_check_branch
        %130 = sbr.rel (%p128) target = $region28
      $region27: #{fft_conv_forward.8} parent=23 // pred_region
        %p131 = scmp.lt.s32.totalorder %s9, 1
        %s132 = scalar_select %p131, %s9, 1
        %s133 = smul.addr %s132, 8
        %s134 = scalar_lea.vmem %s0, %s133
      $region28: #{fft_conv_forward.8} parent=23 // pred_fallthru
        _
    $region24: #{fft_conv_forward.8} parent=5 // pred_fallthru
      _
    %p135 = scmp.le.s32.totalorder 1, %s9
    %p136 = scmp.lt.s32.totalorder %s9, 3
    %p137 = pnand %p135, %p136
    %p138 = pneg %p137
    // Predicated region
    $region29: #{fft_conv_forward.8} parent=5 // pred_check
      _
    $region30: #{fft_conv_forward.8} parent=5 // pred_check_branch
      %140 = sbr.rel (%p137) target = $region32
    $region31: #{fft_conv_forward.8} parent=5 // pred_region
      %s141 = ssub.s32 %s9, 1
      %p142 = scmp.lt.s32.totalorder %s14, 1
      %s143 = scalar_select %p142, %s14, 1
      %s144 = smul.addr %s143, 8
      %s145 = scalar_lea.vmem %s0, %s144
      %p146 = pneg %p35
      %p147 = pneg %p32
      %p148 = pneg %p56
      %p149 = pneg %p53
      %p150 = pneg %p77
      %p151 = pneg %p74
      %p152 = pneg %p103
      %p153 = pneg %p100
      %p154 = scmp.lt.s32.totalorder %s14, 1
      %s155 = scalar_select %p154, %s14, 1
      %s156 = smul.addr %s155, 4
      %s157 = scalar_lea.vmem %s3, %s156
      %p158 = scmp.lt.s32.totalorder %s14, 1
      %s159 = scalar_select %p158, %s14, 1
      %s160 = smul.addr %s159, 8
      %s161 = scalar_lea.vmem %s0, %s160
      %p162 = scmp.lt.s32.totalorder %s14, 1
      %s163 = scalar_select %p162, %s14, 1
      %s164 = smul.addr %s163, 4
      %s165 = scalar_lea.vmem %s3, %s164
      %v167 = vld [vmem:[%s161] sm:$0x1f]
      %v168 = vpack.c.bf16 %v167, %v167
      %v169 = vld [vmem:[%s1] sm:$0xf]
      %v170 = vld [vmem:[%s1 + $0x4] sm:$0xf]
      %v171 = vld [vmem:[%s1 + $0x8] sm:$0xf]
      %v172 = vld [vmem:[%s1 + $0xc] sm:$0xf]
      %v173 = vld [vmem:[%s1 + $0x10] sm:$0xf]
      %v174 = vld [vmem:[%s1 + $0x14] sm:$0xf]
      %v175 = vld [vmem:[%s1 + $0x18] sm:$0xf]
      %v176 = vld [vmem:[%s1 + $0x1c] sm:$0xf]
      %s177 = scalar_lea.vmem %s1, 32
      %v178 = vld [vmem:[%s177] sm:$0xf]
      %v179 = vld [vmem:[%s177 + $0x4] sm:$0xf]
      %v180 = vld [vmem:[%s177 + $0x8] sm:$0xf]
      %v181 = vld [vmem:[%s177 + $0xc] sm:$0xf]
      %v182 = vld [vmem:[%s177 + $0x10] sm:$0xf]
      %v183 = vld [vmem:[%s177 + $0x14] sm:$0xf]
      %v184 = vld [vmem:[%s177 + $0x18] sm:$0xf]
      %v185 = vld [vmem:[%s177 + $0x1c] sm:$0xf]
      %187 = vrot.lane.b32.xlu0 %v168, 64
      %v188 = vpop.permute.xlu0 %187
      %v197 = vunpack.c.l.b16 %v178
      %v198 = vunpack.c.l.b16 %v179
      %v199 = vunpack.c.l.b16 %v180
      %v200 = vunpack.c.l.b16 %v181
      %v201 = vunpack.c.l.b16 %v182
      %v202 = vunpack.c.l.b16 %v183
      %v203 = vunpack.c.l.b16 %v184
      %v204 = vunpack.c.l.b16 %v185
      %v205 = vpack.c.b16 %v198, %v197
      %v206 = vpack.c.b16 %v200, %v199
      %v207 = vpack.c.b16 %v202, %v201
      %v208 = vpack.c.b16 %v204, %v203
      %vm213 = vcmask 523264
      %v215 = vsel %vm213, %v188, 0
      %217 = vmatprep.subr.bf16.mxu0 0
      %218 = vmatpush1.bf16.msra.mxu0 %v205
      %219 = vmatprep.subr.bf16.mxu0 0
      %220 = vmatpush1.bf16.msra.mxu0 %v206
      %221 = vmatprep.subr.bf16.mxu0 0
      %222 = vmatpush1.bf16.msra.mxu0 %v207
      %223 = vmatprep.subr.bf16.mxu0 0
      %224 = vmatpush1.bf16.msra.mxu0 %v208
      %225 = vmatprep.subr.bf16.mxu0 0
      %226 = vmatpush1.bf16.msra.mxu0 0
      %227 = vmatprep.subr.bf16.mxu0 0
      %228 = vmatpush1.bf16.msra.mxu0 0
      %229 = vmatprep.subr.bf16.mxu0 0
      %230 = vmatpush1.bf16.msra.mxu0 0
      %231 = vmatprep.subr.bf16.mxu0 0
      %232 = vmatpush1.bf16.msra.mxu0 0
      %233 = vmatprep.subr.bf16.mxu0 0
      %234 = vmatpush1.bf16.msra.mxu0 0
      %235 = vmatprep.subr.bf16.mxu0 0
      %236 = vmatpush1.bf16.msra.mxu0 0
      %237 = vmatprep.subr.bf16.mxu0 0
      %238 = vmatpush1.bf16.msra.mxu0 0
      %239 = vmatprep.subr.bf16.mxu0 0
      %240 = vmatpush1.bf16.msra.mxu0 0
      %241 = vmatprep.subr.bf16.mxu0 0
      %242 = vmatpush1.bf16.msra.mxu0 0
      %243 = vmatprep.subr.bf16.mxu0 0
      %244 = vmatpush1.bf16.msra.mxu0 0
      %245 = vmatprep.subr.bf16.mxu0 0
      %246 = vmatpush1.bf16.msra.mxu0 0
      %247 = vmatprep.subr.bf16.mxu0 0
      %248 = vmatpush1.bf16.msra.mxu0 0
      %249 = vmatprep.mubr.bf16.mxu0 0
      %250 = vmatmul.mubr.bf16.gmra.mrb[0].mxu0 %v215
      %v251 = vpop.f32.mrb[0].mxu0
      %v252 = vadd.f32 0.0, %v251
      %v253 = vpop.f32.mrb[0].mxu0
      %v254 = vpop.f32.mrb[0].mxu0
      %v255 = vpop.f32.mrb[0].mxu0
      %256 = vdwg.mxu0
      %v265 = vunpack.c.l.b16 %v169
      %v266 = vunpack.c.l.b16 %v170
      %v267 = vunpack.c.l.b16 %v171
      %v268 = vunpack.c.l.b16 %v172
      %v269 = vunpack.c.l.b16 %v173
      %v270 = vunpack.c.l.b16 %v174
      %v271 = vunpack.c.l.b16 %v175
      %v272 = vunpack.c.l.b16 %v176
      %v273 = vpack.c.b16 %v266, %v265
      %v274 = vpack.c.b16 %v268, %v267
      %v275 = vpack.c.b16 %v270, %v269
      %v276 = vpack.c.b16 %v272, %v271
      %v282 = vsel %vm213, %v168, 0
      %284 = vmatprep.subr.bf16.mxu0 0
      %285 = vmatpush1.bf16.msra.mxu0 %v273
      %286 = vmatprep.subr.bf16.mxu0 0
      %287 = vmatpush1.bf16.msra.mxu0 %v274
      %288 = vmatprep.subr.bf16.mxu0 0
      %289 = vmatpush1.bf16.msra.mxu0 %v275
      %290 = vmatprep.subr.bf16.mxu0 0
      %291 = vmatpush1.bf16.msra.mxu0 %v276
      %292 = vmatprep.subr.bf16.mxu0 0
      %293 = vmatpush1.bf16.msra.mxu0 0
      %294 = vmatprep.subr.bf16.mxu0 0
      %295 = vmatpush1.bf16.msra.mxu0 0
      %296 = vmatprep.subr.bf16.mxu0 0
      %297 = vmatpush1.bf16.msra.mxu0 0
      %298 = vmatprep.subr.bf16.mxu0 0
      %299 = vmatpush1.bf16.msra.mxu0 0
      %300 = vmatprep.subr.bf16.mxu0 0
      %301 = vmatpush1.bf16.msra.mxu0 0
      %302 = vmatprep.subr.bf16.mxu0 0
      %303 = vmatpush1.bf16.msra.mxu0 0
      %304 = vmatprep.subr.bf16.mxu0 0
      %305 = vmatpush1.bf16.msra.mxu0 0
      %306 = vmatprep.subr.bf16.mxu0 0
      %307 = vmatpush1.bf16.msra.mxu0 0
      %308 = vmatprep.subr.bf16.mxu0 0
      %309 = vmatpush1.bf16.msra.mxu0 0
      %310 = vmatprep.subr.bf16.mxu0 0
      %311 = vmatpush1.bf16.msra.mxu0 0
      %312 = vmatprep.subr.bf16.mxu0 0
      %313 = vmatpush1.bf16.msra.mxu0 0
      %314 = vmatprep.subr.bf16.mxu0 0
      %315 = vmatpush1.bf16.msra.mxu0 0
      %316 = vmatprep.mubr.bf16.mxu0 0
      %317 = vmatmul.mubr.bf16.gmra.mrb[0].mxu0 %v282
      %v318 = vpop.f32.mrb[0].mxu0
      %v319 = vadd.f32 %v252, %v318
      %v320 = vpop.f32.mrb[0].mxu0
      %v321 = vpop.f32.mrb[0].mxu0
      %v322 = vpop.f32.mrb[0].mxu0
      %323 = vdwg.mxu0
      %s324 = scalar_lea.vmem %s1, 64
      %v325 = vld [vmem:[%s324] sm:$0xf]
      %v326 = vld [vmem:[%s324 + $0x4] sm:$0xf]
      %v327 = vld [vmem:[%s324 + $0x8] sm:$0xf]
      %v328 = vld [vmem:[%s324 + $0xc] sm:$0xf]
      %v329 = vld [vmem:[%s324 + $0x10] sm:$0xf]
      %v330 = vld [vmem:[%s324 + $0x14] sm:$0xf]
      %v331 = vld [vmem:[%s324 + $0x18] sm:$0xf]
      %v332 = vld [vmem:[%s324 + $0x1c] sm:$0xf]
      %v333 = vshrl.u32 %v168, 16
      %v335 = vshll.u32 %v168, 16
      %v337 = vrot.slane %v335, 1
      %v338 = vor.u32 %v333, %v337
      %v347 = vunpack.c.l.b16 %v325
      %v348 = vunpack.c.l.b16 %v326
      %v349 = vunpack.c.l.b16 %v327
      %v350 = vunpack.c.l.b16 %v328
      %v351 = vunpack.c.l.b16 %v329
      %v352 = vunpack.c.l.b16 %v330
      %v353 = vunpack.c.l.b16 %v331
      %v354 = vunpack.c.l.b16 %v332
      %v355 = vpack.c.b16 %v348, %v347
      %v356 = vpack.c.b16 %v350, %v349
      %v357 = vpack.c.b16 %v352, %v351
      %v358 = vpack.c.b16 %v354, %v353
      %v364 = vsel %vm213, %v338, 0
      %366 = vmatprep.subr.bf16.mxu0 0
      %367 = vmatpush1.bf16.msra.mxu0 %v355
      %368 = vmatprep.subr.bf16.mxu0 0
      %369 = vmatpush1.bf16.msra.mxu0 %v356
      %370 = vmatprep.subr.bf16.mxu0 0
      %371 = vmatpush1.bf16.msra.mxu0 %v357
      %372 = vmatprep.subr.bf16.mxu0 0
      %373 = vmatpush1.bf16.msra.mxu0 %v358
      %374 = vmatprep.subr.bf16.mxu0 0
      %375 = vmatpush1.bf16.msra.mxu0 0
      %376 = vmatprep.subr.bf16.mxu0 0
      %377 = vmatpush1.bf16.msra.mxu0 0
      %378 = vmatprep.subr.bf16.mxu0 0
      %379 = vmatpush1.bf16.msra.mxu0 0
      %380 = vmatprep.subr.bf16.mxu0 0
      %381 = vmatpush1.bf16.msra.mxu0 0
      %382 = vmatprep.subr.bf16.mxu0 0
      %383 = vmatpush1.bf16.msra.mxu0 0
      %384 = vmatprep.subr.bf16.mxu0 0
      %385 = vmatpush1.bf16.msra.mxu0 0
      %386 = vmatprep.subr.bf16.mxu0 0
      %387 = vmatpush1.bf16.msra.mxu0 0
      %388 = vmatprep.subr.bf16.mxu0 0
      %389 = vmatpush1.bf16.msra.mxu0 0
      %390 = vmatprep.subr.bf16.mxu0 0
      %391 = vmatpush1.bf16.msra.mxu0 0
      %392 = vmatprep.subr.bf16.mxu0 0
      %393 = vmatpush1.bf16.msra.mxu0 0
      %394 = vmatprep.subr.bf16.mxu0 0
      %395 = vmatpush1.bf16.msra.mxu0 0
      %396 = vmatprep.subr.bf16.mxu0 0
      %397 = vmatpush1.bf16.msra.mxu0 0
      %398 = vmatprep.mubr.bf16.mxu0 0
      %399 = vmatmul.mubr.bf16.gmra.mrb[0].mxu0 %v364
      %v400 = vpop.f32.mrb[0].mxu0
      %v401 = vadd.f32 0.0, %v400
      %v402 = vpop.f32.mrb[0].mxu0
      %v403 = vpop.f32.mrb[0].mxu0
      %v404 = vpop.f32.mrb[0].mxu0
      %405 = vdwg.mxu0
      %v406 = vadd.f32 %v319, %v401
      %s407 = scalar_lea.vmem %s1, 96
      %v408 = vld [vmem:[%s407] sm:$0xf]
      %v409 = vld [vmem:[%s407 + $0x4] sm:$0xf]
      %v410 = vld [vmem:[%s407 + $0x8] sm:$0xf]
      %v411 = vld [vmem:[%s407 + $0xc] sm:$0xf]
      %v412 = vld [vmem:[%s407 + $0x10] sm:$0xf]
      %v413 = vld [vmem:[%s407 + $0x14] sm:$0xf]
      %v414 = vld [vmem:[%s407 + $0x18] sm:$0xf]
      %v415 = vld [vmem:[%s407 + $0x1c] sm:$0xf]
      %416 = vrot.lane.b32.xlu0 %v338, 64
      %v417 = vpop.permute.xlu0 %416
      %v426 = vunpack.c.l.b16 %v408
      %v427 = vunpack.c.l.b16 %v409
      %v428 = vunpack.c.l.b16 %v410
      %v429 = vunpack.c.l.b16 %v411
      %v430 = vunpack.c.l.b16 %v412
      %v431 = vunpack.c.l.b16 %v413
      %v432 = vunpack.c.l.b16 %v414
      %v433 = vunpack.c.l.b16 %v415
      %v434 = vpack.c.b16 %v427, %v426
      %v435 = vpack.c.b16 %v429, %v428
      %v436 = vpack.c.b16 %v431, %v430
      %v437 = vpack.c.b16 %v433, %v432
      %v443 = vsel %vm213, %v417, 0
      %445 = vmatprep.subr.bf16.mxu0 0
      %446 = vmatpush1.bf16.msra.mxu0 %v434
      %447 = vmatprep.subr.bf16.mxu0 0
      %448 = vmatpush1.bf16.msra.mxu0 %v435
      %449 = vmatprep.subr.bf16.mxu0 0
      %450 = vmatpush1.bf16.msra.mxu0 %v436
      %451 = vmatprep.subr.bf16.mxu0 0
      %452 = vmatpush1.bf16.msra.mxu0 %v437
      %453 = vmatprep.subr.bf16.mxu0 0
      %454 = vmatpush1.bf16.msra.mxu0 0
      %455 = vmatprep.subr.bf16.mxu0 0
      %456 = vmatpush1.bf16.msra.mxu0 0
      %457 = vmatprep.subr.bf16.mxu0 0
      %458 = vmatpush1.bf16.msra.mxu0 0
      %459 = vmatprep.subr.bf16.mxu0 0
      %460 = vmatpush1.bf16.msra.mxu0 0
      %461 = vmatprep.subr.bf16.mxu0 0
      %462 = vmatpush1.bf16.msra.mxu0 0
      %463 = vmatprep.subr.bf16.mxu0 0
      %464 = vmatpush1.bf16.msra.mxu0 0
      %465 = vmatprep.subr.bf16.mxu0 0
      %466 = vmatpush1.bf16.msra.mxu0 0
      %467 = vmatprep.subr.bf16.mxu0 0
      %468 = vmatpush1.bf16.msra.mxu0 0
      %469 = vmatprep.subr.bf16.mxu0 0
      %470 = vmatpush1.bf16.msra.mxu0 0
      %471 = vmatprep.subr.bf16.mxu0 0
      %472 = vmatpush1.bf16.msra.mxu0 0
      %473 = vmatprep.subr.bf16.mxu0 0
      %474 = vmatpush1.bf16.msra.mxu0 0
      %475 = vmatprep.subr.bf16.mxu0 0
      %476 = vmatpush1.bf16.msra.mxu0 0
      %477 = vmatprep.mubr.bf16.mxu0 0
      %478 = vmatmul.mubr.bf16.gmra.mrb[0].mxu0 %v443
      %v479 = vpop.f32.mrb[0].mxu0
      %v480 = vadd.f32 0.0, %v479
      %v481 = vpop.f32.mrb[0].mxu0
      %v482 = vpop.f32.mrb[0].mxu0
      %v483 = vpop.f32.mrb[0].mxu0
      %484 = vdwg.mxu0
      %v485 = vadd.f32 %v406, %v480
      %s486 = scalar_lea.vmem %s1, 128
      %v487 = vld [vmem:[%s486] sm:$0xf]
      %v488 = vld [vmem:[%s486 + $0x4] sm:$0xf]
      %v489 = vld [vmem:[%s486 + $0x8] sm:$0xf]
      %v490 = vld [vmem:[%s486 + $0xc] sm:$0xf]
      %v491 = vld [vmem:[%s486 + $0x10] sm:$0xf]
      %v492 = vld [vmem:[%s486 + $0x14] sm:$0xf]
      %v493 = vld [vmem:[%s486 + $0x18] sm:$0xf]
      %v494 = vld [vmem:[%s486 + $0x1c] sm:$0xf]
      %v495 = vrot.slane %v168, 1
      %v504 = vunpack.c.l.b16 %v487
      %v505 = vunpack.c.l.b16 %v488
      %v506 = vunpack.c.l.b16 %v489
      %v507 = vunpack.c.l.b16 %v490
      %v508 = vunpack.c.l.b16 %v491
      %v509 = vunpack.c.l.b16 %v492
      %v510 = vunpack.c.l.b16 %v493
      %v511 = vunpack.c.l.b16 %v494
      %v512 = vpack.c.b16 %v505, %v504
      %v513 = vpack.c.b16 %v507, %v506
      %v514 = vpack.c.b16 %v509, %v508
      %v515 = vpack.c.b16 %v511, %v510
      %v521 = vsel %vm213, %v495, 0
      %523 = vmatprep.subr.bf16.mxu0 0
      %524 = vmatpush1.bf16.msra.mxu0 %v512
      %525 = vmatprep.subr.bf16.mxu0 0
      %526 = vmatpush1.bf16.msra.mxu0 %v513
      %527 = vmatprep.subr.bf16.mxu0 0
      %528 = vmatpush1.bf16.msra.mxu0 %v514
      %529 = vmatprep.subr.bf16.mxu0 0
      %530 = vmatpush1.bf16.msra.mxu0 %v515
      %531 = vmatprep.subr.bf16.mxu0 0
      %532 = vmatpush1.bf16.msra.mxu0 0
      %533 = vmatprep.subr.bf16.mxu0 0
      %534 = vmatpush1.bf16.msra.mxu0 0
      %535 = vmatprep.subr.bf16.mxu0 0
      %536 = vmatpush1.bf16.msra.mxu0 0
      %537 = vmatprep.subr.bf16.mxu0 0
      %538 = vmatpush1.bf16.msra.mxu0 0
      %539 = vmatprep.subr.bf16.mxu0 0
      %540 = vmatpush1.bf16.msra.mxu0 0
      %541 = vmatprep.subr.bf16.mxu0 0
      %542 = vmatpush1.bf16.msra.mxu0 0
      %543 = vmatprep.subr.bf16.mxu0 0
      %544 = vmatpush1.bf16.msra.mxu0 0
      %545 = vmatprep.subr.bf16.mxu0 0
      %546 = vmatpush1.bf16.msra.mxu0 0
      %547 = vmatprep.subr.bf16.mxu0 0
      %548 = vmatpush1.bf16.msra.mxu0 0
      %549 = vmatprep.subr.bf16.mxu0 0
      %550 = vmatpush1.bf16.msra.mxu0 0
      %551 = vmatprep.subr.bf16.mxu0 0
      %552 = vmatpush1.bf16.msra.mxu0 0
      %553 = vmatprep.subr.bf16.mxu0 0
      %554 = vmatpush1.bf16.msra.mxu0 0
      %555 = vmatprep.mubr.bf16.mxu0 0
      %556 = vmatmul.mubr.bf16.gmra.mrb[0].mxu0 %v521
      %v557 = vpop.f32.mrb[0].mxu0
      %v558 = vadd.f32 0.0, %v557
      %v559 = vpop.f32.mrb[0].mxu0
      %v560 = vpop.f32.mrb[0].mxu0
      %v561 = vpop.f32.mrb[0].mxu0
      %562 = vdwg.mxu0
      %v563 = vadd.f32 %v485, %v558
      %v564 = vld [vmem:[%s2] sm:$0x1]
      %v566 = vlaneseq
      %v567 = vshrl.u32 %v566, 7
      %v568 = vsub.s32 0, %v567
      %v569 = vrot.slane %v564, %v568
      %v571 = vadd.f32 %v563, %v569
      %v572 = vmax.f32 %v571, 0.0
      %vm573 = vcmask 256000
      %574 = vst.msk [vmem:[%s165] sm:$0x7] %vm573, %v572
      %p575 = scmp.lt.s32.totalorder %s14, 1
      %s576 = scalar_select %p575, %s14, 1
      %s577 = smul.addr %s576, 4
      %s578 = scalar_lea.vmem %s3, %s577
      // Predicated region
      $region33: #{fft_conv_forward.8} parent=31 // pred_check
        %p579 = pneg %p100
      $region34: #{fft_conv_forward.8} parent=31 // pred_check_branch
        %581 = sbr.rel (%p579) target = $region36
      $region35: #{fft_conv_forward.8} parent=31 // pred_region
        _
      $region36: #{fft_conv_forward.8} parent=31 // pred_fallthru
        _
    $region32: #{fft_conv_forward.8} parent=5 // pred_fallthru
      _
    %p582 = scmp.le.s32.totalorder 2, %s9
    // Predicated region
    $region37: #{fft_conv_forward.8} parent=5 // pred_check
      %p583 = pneg %p582
    $region38: #{fft_conv_forward.8} parent=5 // pred_check_branch
      %585 = sbr.rel (%p583) target = $region40
    $region39: #{fft_conv_forward.8} parent=5 // pred_region
      %s586 = ssub.s32 %s9, 2
      // Predicated region
      $region41: #{fft_conv_forward.8} parent=39 // pred_check
        %p587 = pneg %p106
      $region42: #{fft_conv_forward.8} parent=39 // pred_check_branch
        %589 = sbr.rel (%p587) target = $region44
      $region43: #{fft_conv_forward.8} parent=39 // pred_region
        %p590 = scmp.lt.s32.totalorder %s15, 1
        %s591 = scalar_select %p590, %s15, 1
        %s592 = smul.addr %s591, 4
        %s593 = scalar_lea.vmem %s3, %s592
      $region44: #{fft_conv_forward.8} parent=39 // pred_fallthru
        _
    $region40: #{fft_conv_forward.8} parent=5 // pred_fallthru
      _
  $region6: #{fft_conv_forward.8} parent=0 // loop_footer
    %s13 = sadd.s32 1, %s9
  $region7: #{fft_conv_forward.8} parent=0 // loop_footer_branch
    %8 = sbr.rel target = $region3
  $region8: #{fft_conv_forward.8} parent=0 // loop_exit
    _

// kernel: fft_conv_forward.9
$region0: #{fft_conv_forward.9}
  #allocation0 [shape = 'u32[]', space=smem, size = 0x4, offset = 0x4, fixed_abs, tag = 'smem constant byte address 0x4 - core index']
  #allocation1 [shape = 'u32[144,128]{1,0:T(1,128)}', space=vmem, size = 0x12000, scoped, tag = 'internal scratch']
  #allocation2 [shape = 'f32[1,1]{1,0:T(1,128)S(1)}', space=vmem, size = 0x200, scoped, tag = 'scoped memory for fft_conv_forward.9']
  %s0 = inlined_call_operand.vmem [shape: f32[8,96], index: 0, kind: input, shape index: {}]
  %s1 = inlined_call_operand.vmem [shape: bf16[96,128], index: 1, kind: input, shape index: {}]
  %s2 = inlined_call_operand.vmem [shape: f32[1,128], index: 2, kind: input, shape index: {}]
  %s3 = inlined_call_operand.vmem [shape: bf16[128,32], index: 3, kind: input, shape index: {}]
  %s4 = inlined_call_operand.vmem [shape: f32[1,32], index: 4, kind: input, shape index: {}]
  %s5 = inlined_call_operand.vmem [shape: f32[1,32], index: 5, kind: input, shape index: {}]
  %s6 = inlined_call_operand.<no memory space> [shape: f32[1,1], index: 6, kind: input, shape index: {}]
  %s7 = inlined_call_operand.vmem [shape: f32[8,1], index: 7, kind: output, shape index: {}]
  %s8 = sld [smem:[#allocation0]]
  $region38: #{fft_conv_forward.9} parent=0
    _
  %s10 = ssub.s32 1, %s8
  %s11 = scalar_select 0, %s10, %s8
  %v12 = vstv %s6
  %13 = vst [vmem:[#allocation2] sm:$0x1] %v12
  // Predicated region
  $region2: #{fft_conv_forward.9} parent=0 // pred_check
    _
  $region3: #{fft_conv_forward.9} parent=0 // pred_check_branch
    %15 = sbr.rel (0) target = $region5
  $region4: #{fft_conv_forward.9} parent=0 // pred_region
    _
  $region5: #{fft_conv_forward.9} parent=0 // pred_fallthru
    _
  // Predicated region
  $region6: #{fft_conv_forward.9} parent=0 // pred_check
    _
  $region7: #{fft_conv_forward.9} parent=0 // pred_check_branch
    %17 = sbr.rel (0) target = $region9
  $region8: #{fft_conv_forward.9} parent=0 // pred_region
    _
  $region9: #{fft_conv_forward.9} parent=0 // pred_fallthru
    _
  // Predicated region
  $region10: #{fft_conv_forward.9} parent=0 // pred_check
    _
  $region11: #{fft_conv_forward.9} parent=0 // pred_check_branch
    %19 = sbr.rel (0) target = $region13
  $region12: #{fft_conv_forward.9} parent=0 // pred_region
    _
  $region13: #{fft_conv_forward.9} parent=0 // pred_fallthru
    _
  // Predicated region
  $region14: #{fft_conv_forward.9} parent=0 // pred_check
    _
  $region15: #{fft_conv_forward.9} parent=0 // pred_check_branch
    %21 = sbr.rel (0) target = $region17
  $region16: #{fft_conv_forward.9} parent=0 // pred_region
    _
  $region17: #{fft_conv_forward.9} parent=0 // pred_fallthru
    _
  // Predicated region
  $region18: #{fft_conv_forward.9} parent=0 // pred_check
    _
  $region19: #{fft_conv_forward.9} parent=0 // pred_check_branch
    %23 = sbr.rel (0) target = $region21
  $region20: #{fft_conv_forward.9} parent=0 // pred_region
    _
  $region21: #{fft_conv_forward.9} parent=0 // pred_fallthru
    _
  // Predicated region
  $region22: #{fft_conv_forward.9} parent=0 // pred_check
    _
  $region23: #{fft_conv_forward.9} parent=0 // pred_check_branch
    %25 = sbr.rel (0) target = $region25
  $region24: #{fft_conv_forward.9} parent=0 // pred_region
    _
  $region25: #{fft_conv_forward.9} parent=0 // pred_fallthru
    _
  // Predicated region
  $region26: #{fft_conv_forward.9} parent=0 // pred_check
    _
  $region27: #{fft_conv_forward.9} parent=0 // pred_check_branch
    %27 = sbr.rel (0) target = $region29
  $region28: #{fft_conv_forward.9} parent=0 // pred_region
    _
  $region29: #{fft_conv_forward.9} parent=0 // pred_fallthru
    _
  %v29 = vld [vmem:[%s0] sm:$0xff]
  %v30 = vpack.c.bf16 %v29, %v29
  %v31 = vld [vmem:[%s1] sm:$0xf]
  %v32 = vld [vmem:[%s1 + $0x4] sm:$0xf]
  %v33 = vld [vmem:[%s1 + $0x8] sm:$0xf]
  %v34 = vld [vmem:[%s1 + $0xc] sm:$0xf]
  %v35 = vld [vmem:[%s1 + $0x10] sm:$0xf]
  %v36 = vld [vmem:[%s1 + $0x14] sm:$0xf]
  %v37 = vld [vmem:[%s1 + $0x18] sm:$0xf]
  %v38 = vld [vmem:[%s1 + $0x1c] sm:$0xf]
  %v39 = vld [vmem:[%s1 + $0x20] sm:$0xf]
  %v40 = vld [vmem:[%s1 + $0x24] sm:$0xf]
  %v41 = vld [vmem:[%s1 + $0x28] sm:$0xf]
  %v42 = vld [vmem:[%s1 + $0x2c] sm:$0xf]
  %v43 = vld [vmem:[%s2] sm:$0x1]
  %v45 = vlaneseq
  %v46 = vshrl.u32 %v45, 7
  %v47 = vsub.s32 0, %v46
  %v48 = vrot.slane %v43, %v47
  %v62 = vunpack.c.l.b16 %v31
  %v63 = vunpack.c.l.b16 %v32
  %v64 = vunpack.c.l.b16 %v33
  %v65 = vunpack.c.l.b16 %v34
  %v66 = vunpack.c.l.b16 %v35
  %v67 = vunpack.c.l.b16 %v36
  %v68 = vunpack.c.l.b16 %v37
  %v69 = vunpack.c.l.b16 %v38
  %v70 = vunpack.c.l.b16 %v39
  %v71 = vunpack.c.l.b16 %v40
  %v72 = vunpack.c.l.b16 %v41
  %v73 = vunpack.c.l.b16 %v42
  %v74 = vpack.c.b16 %v63, %v62
  %v75 = vpack.c.b16 %v65, %v64
  %v76 = vpack.c.b16 %v67, %v66
  %v77 = vpack.c.b16 %v69, %v68
  %v78 = vpack.c.b16 %v71, %v70
  %v79 = vpack.c.b16 %v73, %v72
  %vm86 = vcmask 785408
  %v88 = vsel %vm86, %v30, 0
  %90 = vmatprep.subr.bf16.mxu0 0
  %91 = vmatpush1.bf16.msra.mxu0 %v74
  %92 = vmatprep.subr.bf16.mxu0 0
  %93 = vmatpush1.bf16.msra.mxu0 %v75
  %94 = vmatprep.subr.bf16.mxu0 0
  %95 = vmatpush1.bf16.msra.mxu0 %v76
  %96 = vmatprep.subr.bf16.mxu0 0
  %97 = vmatpush1.bf16.msra.mxu0 %v77
  %98 = vmatprep.subr.bf16.mxu0 0
  %99 = vmatpush1.bf16.msra.mxu0 %v78
  %100 = vmatprep.subr.bf16.mxu0 0
  %101 = vmatpush1.bf16.msra.mxu0 %v79
  %102 = vmatprep.subr.bf16.mxu0 0
  %103 = vmatpush1.bf16.msra.mxu0 0
  %104 = vmatprep.subr.bf16.mxu0 0
  %105 = vmatpush1.bf16.msra.mxu0 0
  %106 = vmatprep.subr.bf16.mxu0 0
  %107 = vmatpush1.bf16.msra.mxu0 0
  %108 = vmatprep.subr.bf16.mxu0 0
  %109 = vmatpush1.bf16.msra.mxu0 0
  %110 = vmatprep.subr.bf16.mxu0 0
  %111 = vmatpush1.bf16.msra.mxu0 0
  %112 = vmatprep.subr.bf16.mxu0 0
  %113 = vmatpush1.bf16.msra.mxu0 0
  %114 = vmatprep.subr.bf16.mxu0 0
  %115 = vmatpush1.bf16.msra.mxu0 0
  %116 = vmatprep.subr.bf16.mxu0 0
  %117 = vmatpush1.bf16.msra.mxu0 0
  %118 = vmatprep.subr.bf16.mxu0 0
  %119 = vmatpush1.bf16.msra.mxu0 0
  %120 = vmatprep.subr.bf16.mxu0 0
  %121 = vmatpush1.bf16.msra.mxu0 0
  %122 = vmatprep.mubr.bf16.mxu0 0
  %123 = vmatmul.mubr.bf16.gmra.mrb[0].mxu0 %v88
  %v124 = vpop.f32.mrb[0].mxu0
  %v125 = vadd.f32 %v48, %v124
  %v126 = vpop.f32.mrb[0].mxu0
  %v127 = vpop.f32.mrb[0].mxu0
  %v128 = vpop.f32.mrb[0].mxu0
  %129 = vdwg.mxu0
  %v130 = vmax.f32 %v125, 0.0
  %v131 = vpack.c.bf16 %v130, %v130
  %v132 = vld [vmem:[%s3] sm:$0xf]
  %v133 = vld [vmem:[%s3 + $0x4] sm:$0xf]
  %v134 = vld [vmem:[%s3 + $0x8] sm:$0xf]
  %v135 = vld [vmem:[%s3 + $0xc] sm:$0xf]
  %v136 = vld [vmem:[%s3 + $0x10] sm:$0xf]
  %v137 = vld [vmem:[%s3 + $0x14] sm:$0xf]
  %v138 = vld [vmem:[%s3 + $0x18] sm:$0xf]
  %v139 = vld [vmem:[%s3 + $0x1c] sm:$0xf]
  %v140 = vld [vmem:[%s3 + $0x20] sm:$0xf]
  %v141 = vld [vmem:[%s3 + $0x24] sm:$0xf]
  %v142 = vld [vmem:[%s3 + $0x28] sm:$0xf]
  %v143 = vld [vmem:[%s3 + $0x2c] sm:$0xf]
  %v144 = vld [vmem:[%s3 + $0x30] sm:$0xf]
  %v145 = vld [vmem:[%s3 + $0x34] sm:$0xf]
  %v146 = vld [vmem:[%s3 + $0x38] sm:$0xf]
  %v147 = vld [vmem:[%s3 + $0x3c] sm:$0xf]
  %v148 = vld [vmem:[%s4] sm:$0x1]
  %v150 = vlaneseq
  %v151 = vshrl.u32 %v150, 7
  %v152 = vsub.s32 0, %v151
  %v153 = vrot.slane %v148, %v152
  %v171 = vunpack.c.l.b16 %v132
  %v172 = vunpack.c.l.b16 %v133
  %v173 = vunpack.c.l.b16 %v134
  %v174 = vunpack.c.l.b16 %v135
  %v175 = vunpack.c.l.b16 %v136
  %v176 = vunpack.c.l.b16 %v137
  %v177 = vunpack.c.l.b16 %v138
  %v178 = vunpack.c.l.b16 %v139
  %v179 = vunpack.c.l.b16 %v140
  %v180 = vunpack.c.l.b16 %v141
  %v181 = vunpack.c.l.b16 %v142
  %v182 = vunpack.c.l.b16 %v143
  %v183 = vunpack.c.l.b16 %v144
  %v184 = vunpack.c.l.b16 %v145
  %v185 = vunpack.c.l.b16 %v146
  %v186 = vunpack.c.l.b16 %v147
  %v187 = vpack.c.b16 %v172, %v171
  %v188 = vpack.c.b16 %v174, %v173
  %v189 = vpack.c.b16 %v176, %v175
  %v190 = vpack.c.b16 %v178, %v177
  %v191 = vpack.c.b16 %v180, %v179
  %v192 = vpack.c.b16 %v182, %v181
  %v193 = vpack.c.b16 %v184, %v183
  %v194 = vpack.c.b16 %v186, %v185
  %203 = vmatprep.subr.bf16.mxu0 0
  %204 = vmatpush1.bf16.msra.mxu0 %v187
  %205 = vmatprep.subr.bf16.mxu0 0
  %206 = vmatpush1.bf16.msra.mxu0 %v188
  %207 = vmatprep.subr.bf16.mxu0 0
  %208 = vmatpush1.bf16.msra.mxu0 %v189
  %209 = vmatprep.subr.bf16.mxu0 0
  %210 = vmatpush1.bf16.msra.mxu0 %v190
  %211 = vmatprep.subr.bf16.mxu0 0
  %212 = vmatpush1.bf16.msra.mxu0 %v191
  %213 = vmatprep.subr.bf16.mxu0 0
  %214 = vmatpush1.bf16.msra.mxu0 %v192
  %215 = vmatprep.subr.bf16.mxu0 0
  %216 = vmatpush1.bf16.msra.mxu0 %v193
  %217 = vmatprep.subr.bf16.mxu0 0
  %218 = vmatpush1.bf16.msra.mxu0 %v194
  %219 = vmatprep.subr.bf16.mxu0 0
  %220 = vmatpush1.bf16.msra.mxu0 0
  %221 = vmatprep.subr.bf16.mxu0 0
  %222 = vmatpush1.bf16.msra.mxu0 0
  %223 = vmatprep.subr.bf16.mxu0 0
  %224 = vmatpush1.bf16.msra.mxu0 0
  %225 = vmatprep.subr.bf16.mxu0 0
  %226 = vmatpush1.bf16.msra.mxu0 0
  %227 = vmatprep.subr.bf16.mxu0 0
  %228 = vmatpush1.bf16.msra.mxu0 0
  %229 = vmatprep.subr.bf16.mxu0 0
  %230 = vmatpush1.bf16.msra.mxu0 0
  %231 = vmatprep.subr.bf16.mxu0 0
  %232 = vmatpush1.bf16.msra.mxu0 0
  %233 = vmatprep.subr.bf16.mxu0 0
  %234 = vmatpush1.bf16.msra.mxu0 0
  %235 = vmatprep.mubr.bf16.mxu0 0
  %236 = vmatmul.mubr.bf16.gmra.mrb[0].mxu0 %v131
  %v237 = vpop.f32.mrb[0].mxu0
  %v238 = vadd.f32 %v153, %v237
  %v239 = vpop.f32.mrb[0].mxu0
  %v240 = vpop.f32.mrb[0].mxu0
  %v241 = vpop.f32.mrb[0].mxu0
  %242 = vdwg.mxu0
  %v243 = vmax.f32 %v238, 0.0
  %v244 = vld [vmem:[%s5] sm:$0x1]
  %v246 = vlaneseq
  %v247 = vshrl.u32 %v246, 7
  %v248 = vsub.s32 0, %v247
  %v249 = vrot.slane %v244, %v248
  %v251 = vmul.f32 %v243, %v249
  %vm252 = vcmask 261120
  %v253 = vsel %vm252, %v251, 0.0
  %254 = vadd.xlane.f32.xlu0 %v253
  %v255 = vpop.xlane.xlu0 %254
  %v256 = vld [vmem:[#allocation2] sm:$0x1]
  %v258 = vlaneseq
  %v259 = vshrl.u32 %v258, 7
  %v260 = vsub.s32 0, %v259
  %v261 = vrot.slane %v256, %v260
  %v263 = vadd.f32 %v255, %v261
  %v264 = vxor.u32 %v263, 2147483648
  %v265 = vmul.f32 %v264, 1.442695
  %v266 = vpow.pop %v265
  %v267 = vadd.f32 %v266, 1.0
  %v268 = vrcp.pop %v267
  %v269 = vmul.f32 1.0, %v268
  %vm270 = vcmask 7168
  %271 = vst.msk [vmem:[%s7] sm:$0xff] %vm270, %v269
  // Predicated region
  $region30: #{fft_conv_forward.9} parent=0 // pred_check
    _
  $region31: #{fft_conv_forward.9} parent=0 // pred_check_branch
    %273 = sbr.rel (0) target = $region33
  $region32: #{fft_conv_forward.9} parent=0 // pred_region
    _
  $region33: #{fft_conv_forward.9} parent=0 // pred_fallthru
    _
  // Predicated region
  $region34: #{fft_conv_forward.9} parent=0 // pred_check
    _
  $region35: #{fft_conv_forward.9} parent=0 // pred_check_branch
    %275 = sbr.rel (0) target = $region37
  $region36: #{fft_conv_forward.9} parent=0 // pred_region
    _
  $region37: #{fft_conv_forward.9} parent=0 // pred_fallthru
    _

</llo_original>
